<compile_context>
chip_gen: v6e
topology: v6e:2x2x1
jax: 0.10.0
libtpu: 0.0.40
codegen_flags: <defaults>
</compile_context>

<pallas_src>
import functools

import jax
import jax.numpy as jnp
import numpy as np
from jax.experimental import pallas as pl
from jax.experimental.pallas import tpu as pltpu


# ----------------------------- fused kernel ---------------------------------

def _global_disc_kernel(x_ref, y_ref, wc0_ref, bc0_ref, wc1_ref, bc1_ref,
                        wl0_ref, bl0_ref, wl1_ref, bl1_ref, wl2_ref, bl2_ref,
                        o_ref, *, TB, W):
    """One TB-sample tile of GlobalDiscriminator.forward, fully VMEM-resident.

    x_ref is (W, TB, Cin); flattened to w-major rows (row r = w*TB + b) so the
    width-3 'same' conv is a sublane roll by +-TB plus width-edge masking, and
    the three taps fuse into a single im2col matmul.
    """
    f32 = jnp.float32
    bf16 = jnp.bfloat16
    WTB = W * TB

    x3 = x_ref[...]                                      # (W, TB, Cin)
    x = x3.reshape(WTB, x3.shape[-1])                    # w-major rows

    # width-edge masks (rows are w-major: first/last TB rows are w==0 / w==W-1)
    rows = jax.lax.broadcasted_iota(jnp.int32, (WTB, 1), 0)
    not_first = rows >= TB
    not_last = rows < WTB - TB

    def conv3_same(h, wk_ref, b_ref):
        # neighbours along w via XLU roll; wrap-around rows masked to zero
        h_prev = jnp.where(not_first, pltpu.roll(h, shift=TB, axis=0), 0.0)
        h_next = jnp.where(not_last, pltpu.roll(h, shift=WTB - TB, axis=0), 0.0)
        taps = jnp.concatenate([h_prev, h, h_next], axis=1)   # (WTB, 3*Cin)
        return (jnp.dot(taps.astype(bf16), wk_ref[...],
                        preferred_element_type=f32) + b_ref[...])

    h = jnp.maximum(conv3_same(x, wc0_ref, bc0_ref), 0.0)     # c0 + ReLU (WTB, 64)
    h = conv3_same(h, wc1_ref, bc1_ref)                       # c1        (WTB, 32)

    # l0: torch's h.view(B, 32*W) @ Wl0.T + b.  The (c, w) flatten-order
    # mismatch is folded into wl0's init-time layout, so here we only
    # lane-concatenate the per-w row blocks into a (TB, W*32) slab and do a
    # single matmul (instead of W serial per-w accumulations).
    slab = jnp.concatenate([h[w * TB:(w + 1) * TB, :] for w in range(W)],
                           axis=1)                             # (TB, W*32)
    h0 = jnp.maximum(jnp.dot(slab.astype(bf16), wl0_ref[...],
                             preferred_element_type=f32) + bl0_ref[...], 0.0)

    # l1 on cat((y, h0), dim=1): one K = ydim+128 matmul.
    cat = jnp.concatenate([y_ref[...], h0], axis=1)            # (TB, L)
    h1 = jnp.maximum(jnp.dot(cat.astype(bf16), wl1_ref[...],
                             preferred_element_type=f32) + bl1_ref[...], 0.0)

    # l2: N == 1 output -> VPU multiply + lane reduction instead of a 1-lane
    # MXU push at the very end of the dependency chain.
    o_ref[...] = (jnp.sum(h1 * wl2_ref[...], axis=-1, keepdims=True)
                  + bl2_ref[...])                              # (TB, 1)


def global_discriminator(y, M, p, *, tb=8):
    """GlobalDiscriminator.forward(y, M) -> (B, 1) scores, one pallas_call.

    Batch is tiled into TB-sample blocks along a 'parallel' grid axis; weights
    stay VMEM-resident across the whole grid (constant index_maps).
    """
    B, C, H, W = M.shape
    assert H == 1, "module semantics (feature-list data) require M of shape (B, C, 1, W)"
    ydim = y.shape[1]
    Bp = ((B + tb - 1) // tb) * tb
    nb = Bp // tb

    # w-major activation slab (W, B, C): the only wrapper-side relayout.
    x = jnp.transpose(M[:, :, 0, :], (2, 0, 1))
    if Bp != B:
        x = jnp.pad(x, ((0, 0), (0, Bp - B), (0, 0)))
        y = jnp.pad(y, ((0, Bp - B), (0, 0)))

    weights = (p['wc0'], p['bc0'], p['wc1'], p['bc1'], p['wl0'], p['bl0'],
               p['wl1'], p['bl1'], p['wl2'], p['bl2'])

    out = pl.pallas_call(
        functools.partial(_global_disc_kernel, TB=tb, W=W),
        out_shape=jax.ShapeDtypeStruct((Bp, 1), jnp.float32),
        grid=(nb,),
        in_specs=[pl.BlockSpec((W, tb, C), lambda i: (0, i, 0)),     # x tile
                  pl.BlockSpec((tb, ydim), lambda i: (i, 0))]        # y tile
                 + [pl.BlockSpec(w.shape, lambda i: (0, 0))          # weights: VMEM-resident
                    for w in weights],
        out_specs=pl.BlockSpec((tb, 1), lambda i: (i, 0)),
        compiler_params=pltpu.CompilerParams(
            dimension_semantics=("parallel",)),
    )(x, y, *weights)
    return out[:B]


# ------------------------------ parameters ----------------------------------

def init_params(key, C, W, ydim):
    """Deterministic synthetic parameters.

    Returns (torch_params, kernel_params): PyTorch-shaped tensors (used by the
    pure-JAX reference check) and the re-laid-out / bf16-cast versions fed to
    the kernel.
    """
    L = 128 + ydim          # l1_in
    l0_in = 32 * W
    ks = jax.random.split(key, 10)

    def rnd(k, shape, fan_in):
        return (jax.random.normal(k, shape, jnp.float32)
                / jnp.sqrt(jnp.float32(fan_in)))

    t = {
        'wc0': rnd(ks[0], (64, C, 3, 3), C * 9),
        'bc0': rnd(ks[1], (64,), C * 9),
        'wc1': rnd(ks[2], (32, 64, 3, 3), 64 * 9),
        'bc1': rnd(ks[3], (32,), 64 * 9),
        'wl0': rnd(ks[4], (128, l0_in), l0_in),
        'bl0': rnd(ks[5], (128,), l0_in),
        'wl1': rnd(ks[6], (L, L), L),
        'bl1': rnd(ks[7], (L,), L),
        'wl2': rnd(ks[8], (1, L), L),
        'bl2': rnd(ks[9], (1,), L),
    }

    bf16 = jnp.bfloat16
    p = {}
    # conv weights: with H == 1 only the middle kernel row (kh == 1) contributes;
    # stack the three width taps on the contraction axis as (kw, cin) to match
    # the in-kernel lane-concat order [prev (kw=0), center (kw=1), next (kw=2)].
    p['wc0'] = (jnp.transpose(t['wc0'][:, :, 1, :], (2, 1, 0))
                .reshape(3 * C, 64).astype(bf16))                    # (3*C, 64)
    p['bc0'] = t['bc0'].reshape(1, 64)
    p['wc1'] = (jnp.transpose(t['wc1'][:, :, 1, :], (2, 1, 0))
                .reshape(3 * 64, 32).astype(bf16))                   # (192, 32)
    p['bc1'] = t['bc1'].reshape(1, 32)
    # l0: torch flattens the conv output as (c, w); the kernel slab is (w, c)-
    # major, so permute the weight's input axis accordingly -> (W*32, 128).
    p['wl0'] = (jnp.transpose(t['wl0'].reshape(128, 32, W), (2, 1, 0))
                .reshape(W * 32, 128).astype(bf16))
    p['bl0'] = t['bl0'].reshape(1, 128)
    p['wl1'] = t['wl1'].T.astype(bf16)       # (in, out); cat order (y, h0) matches
    p['bl1'] = t['bl1'].reshape(1, L)
    p['wl2'] = t['wl2']                      # (1, L) f32 row for the VPU reduce
    p['bl2'] = t['bl2'].reshape(1, 1)
    return t, p


# --------------------------- pure-JAX reference ------------------------------

def _reference_forward(y, M, t):
    """Plain-JAX mirror of GlobalDiscriminator.forward (torch-shaped params)."""
    B, C, H, W = M.shape

    def conv3x3_same(x, w, b):
        xp = jnp.pad(x, ((0, 0), (0, 0), (1, 1), (1, 1)))
        out = jnp.zeros((B, w.shape[0], H, W), jnp.float32)
        for kh in range(3):
            for kw in range(3):
                patch = xp[:, :, kh:kh + H, kw:kw + W]
                out = out + jnp.einsum('bchw,oc->bohw', patch, w[:, :, kh, kw],
                                       precision='highest')
        return out + b.reshape(1, -1, 1, 1)

    h = jax.nn.relu(conv3x3_same(M, t['wc0'], t['bc0']))
    h = conv3x3_same(h, t['wc1'], t['bc1'])
    h = h.reshape(B, -1)
    h = jax.nn.relu(h @ t['wl0'].T + t['bl0'])
    h = jnp.concatenate([y, h], axis=1)
    h = jax.nn.relu(h @ t['wl1'].T + t['bl1'])
    return h @ t['wl2'].T + t['bl2']


# --------------------------------- main --------------------------------------

if __name__ == "__main__":
    B, C, H, W, ydim = 16, 4, 1, 16, 8   # M: (B, C, 1, W), y: (B, ydim)
    key = jax.random.PRNGKey(0)
    k_y, k_m, k_p = jax.random.split(key, 3)
    y = jax.random.normal(k_y, (B, ydim), jnp.float32)
    M = jax.random.normal(k_m, (B, C, H, W), jnp.float32)
    torch_params, kernel_params = init_params(k_p, C, W, ydim)

    scores = jax.jit(functools.partial(global_discriminator, tb=8))(
        y, M, kernel_params)
    jax.block_until_ready(scores)

    ref = _reference_forward(y, M, torch_params)
    np.testing.assert_allclose(np.asarray(scores), np.asarray(ref),
                               rtol=5e-2, atol=5e-2)
    print("KERNEL_OK")
</pallas_src>

<mosaic_0001>
module attributes {stable_mosaic.version = 11 : i64} {
  func.func @_global_disc_kernel(%arg0: i32, %arg1: memref<16x8x4xf32, #tpu.memory_space<vmem>>, %arg2: memref<8x8xf32, #tpu.memory_space<vmem>>, %arg3: memref<12x64xbf16, #tpu.memory_space<vmem>>, %arg4: memref<1x64xf32, #tpu.memory_space<vmem>>, %arg5: memref<192x32xbf16, #tpu.memory_space<vmem>>, %arg6: memref<1x32xf32, #tpu.memory_space<vmem>>, %arg7: memref<512x128xbf16, #tpu.memory_space<vmem>>, %arg8: memref<1x128xf32, #tpu.memory_space<vmem>>, %arg9: memref<136x136xbf16, #tpu.memory_space<vmem>>, %arg10: memref<1x136xf32, #tpu.memory_space<vmem>>, %arg11: memref<1x136xf32, #tpu.memory_space<vmem>>, %arg12: memref<1x1xf32, #tpu.memory_space<vmem>>, %arg13: memref<8x1xf32, #tpu.memory_space<vmem>>) attributes {dimension_semantics = [#tpu.dimension_semantics<parallel>], iteration_bounds = array<i64: 2>, scalar_prefetch = 0 : i64, scratch_operands = 0 : i64, tpu.core_type = #tpu.core_type<tc>, window_params = [{transform_indices = @transform_0, window_bounds = array<i64: 16, 8, 4>}, {transform_indices = @transform_1, window_bounds = array<i64: 8, 8>}, {pipeline_mode = #tpu.pipeline_mode<synchronous>, transform_indices = @transform_2, window_bounds = array<i64: 12, 64>}, {pipeline_mode = #tpu.pipeline_mode<synchronous>, transform_indices = @transform_3, window_bounds = array<i64: 1, 64>}, {pipeline_mode = #tpu.pipeline_mode<synchronous>, transform_indices = @transform_4, window_bounds = array<i64: 192, 32>}, {pipeline_mode = #tpu.pipeline_mode<synchronous>, transform_indices = @transform_5, window_bounds = array<i64: 1, 32>}, {pipeline_mode = #tpu.pipeline_mode<synchronous>, transform_indices = @transform_6, window_bounds = array<i64: 512, 128>}, {pipeline_mode = #tpu.pipeline_mode<synchronous>, transform_indices = @transform_7, window_bounds = array<i64: 1, 128>}, {pipeline_mode = #tpu.pipeline_mode<synchronous>, transform_indices = @transform_8, window_bounds = array<i64: 136, 136>}, {pipeline_mode = #tpu.pipeline_mode<synchronous>, transform_indices = @transform_9, window_bounds = array<i64: 1, 136>}, {pipeline_mode = #tpu.pipeline_mode<synchronous>, transform_indices = @transform_10, window_bounds = array<i64: 1, 136>}, {pipeline_mode = #tpu.pipeline_mode<synchronous>, transform_indices = @transform_11, window_bounds = array<i64: 1, 1>}, {transform_indices = @transform_12, window_bounds = array<i64: 8, 1>}]} {
    %c0 = arith.constant 0 : index
    %c0_0 = arith.constant 0 : index
    %c0_1 = arith.constant 0 : index
    %0 = vector.load %arg1[%c0, %c0_0, %c0_1] : memref<16x8x4xf32, #tpu.memory_space<vmem>>, vector<16x8x4xf32>
    %1 = vector.shape_cast %0 : vector<16x8x4xf32> to vector<128x4xf32>
    %2 = tpu.iota {dimensions = array<i32: 0>} : vector<128x1xi32>
    %c8_i32 = arith.constant 8 : i32
    %3 = vector.broadcast %c8_i32 : i32 to vector<128x1xi32>
    %4 = arith.cmpi sge, %2, %3 : vector<128x1xi32>
    %c120_i32 = arith.constant 120 : i32
    %5 = vector.broadcast %c120_i32 : i32 to vector<128x1xi32>
    %6 = arith.cmpi slt, %2, %5 : vector<128x1xi32>
    %c8_i32_2 = arith.constant 8 : i32
    %7 = tpu.dynamic_rotate %1 by %c8_i32_2 dim 0 : vector<128x4xf32>, i32 -> vector<128x4xf32>
    %cst = arith.constant 0.000000e+00 : f32
    %8 = vector.shape_cast %4 : vector<128x1xi1> to vector<128x1xi1>
    %9 = vector.broadcast %8 : vector<128x1xi1> to vector<128x4xi1>
    %10 = vector.broadcast %cst : f32 to vector<128x4xf32>
    %11 = arith.select %9, %7, %10 : vector<128x4xi1>, vector<128x4xf32>
    %c120_i32_3 = arith.constant 120 : i32
    %12 = tpu.dynamic_rotate %1 by %c120_i32_3 dim 0 : vector<128x4xf32>, i32 -> vector<128x4xf32>
    %cst_4 = arith.constant 0.000000e+00 : f32
    %13 = vector.shape_cast %6 : vector<128x1xi1> to vector<128x1xi1>
    %14 = vector.broadcast %13 : vector<128x1xi1> to vector<128x4xi1>
    %15 = vector.broadcast %cst_4 : f32 to vector<128x4xf32>
    %16 = arith.select %14, %12, %15 : vector<128x4xi1>, vector<128x4xf32>
    %17 = tpu.concatenate %11, %1, %16 in 1 : vector<128x4xf32>, vector<128x4xf32>, vector<128x4xf32> -> vector<128x12xf32>
    %18 = arith.truncf %17 : vector<128x12xf32> to vector<128x12xbf16>
    %c0_5 = arith.constant 0 : index
    %c0_6 = arith.constant 0 : index
    %19 = vector.load %arg3[%c0_5, %c0_6] : memref<12x64xbf16, #tpu.memory_space<vmem>>, vector<12x64xbf16>
    %cst_7 = arith.constant dense<0.000000e+00> : vector<128x64xf32>
    %20 = tpu.matmul %18, %19, %cst_7 {dimension_numbers = #tpu.dot_dimension_numbers<[1], [0], [0], [1], [0, 0, 1, 1], [], []>} : vector<128x12xbf16>, vector<12x64xbf16>, vector<128x64xf32> -> vector<128x64xf32>
    %c0_8 = arith.constant 0 : index
    %c0_9 = arith.constant 0 : index
    %21 = vector.load %arg4[%c0_8, %c0_9] : memref<1x64xf32, #tpu.memory_space<vmem>>, vector<1x64xf32>
    %22 = vector.broadcast %21 : vector<1x64xf32> to vector<128x64xf32>
    %23 = arith.addf %20, %22 : vector<128x64xf32>
    %cst_10 = arith.constant 0.000000e+00 : f32
    %24 = vector.broadcast %cst_10 : f32 to vector<128x64xf32>
    %25 = arith.maximumf %23, %24 : vector<128x64xf32>
    %c8_i32_11 = arith.constant 8 : i32
    %26 = tpu.dynamic_rotate %25 by %c8_i32_11 dim 0 : vector<128x64xf32>, i32 -> vector<128x64xf32>
    %cst_12 = arith.constant 0.000000e+00 : f32
    %27 = vector.shape_cast %4 : vector<128x1xi1> to vector<128x1xi1>
    %28 = vector.broadcast %27 : vector<128x1xi1> to vector<128x64xi1>
    %29 = vector.broadcast %cst_12 : f32 to vector<128x64xf32>
    %30 = arith.select %28, %26, %29 : vector<128x64xi1>, vector<128x64xf32>
    %c120_i32_13 = arith.constant 120 : i32
    %31 = tpu.dynamic_rotate %25 by %c120_i32_13 dim 0 : vector<128x64xf32>, i32 -> vector<128x64xf32>
    %cst_14 = arith.constant 0.000000e+00 : f32
    %32 = vector.shape_cast %6 : vector<128x1xi1> to vector<128x1xi1>
    %33 = vector.broadcast %32 : vector<128x1xi1> to vector<128x64xi1>
    %34 = vector.broadcast %cst_14 : f32 to vector<128x64xf32>
    %35 = arith.select %33, %31, %34 : vector<128x64xi1>, vector<128x64xf32>
    %36 = tpu.concatenate %30, %25, %35 in 1 : vector<128x64xf32>, vector<128x64xf32>, vector<128x64xf32> -> vector<128x192xf32>
    %37 = arith.truncf %36 : vector<128x192xf32> to vector<128x192xbf16>
    %c0_15 = arith.constant 0 : index
    %c0_16 = arith.constant 0 : index
    %38 = vector.load %arg5[%c0_15, %c0_16] : memref<192x32xbf16, #tpu.memory_space<vmem>>, vector<192x32xbf16>
    %cst_17 = arith.constant dense<0.000000e+00> : vector<128x32xf32>
    %39 = tpu.matmul %37, %38, %cst_17 {dimension_numbers = #tpu.dot_dimension_numbers<[1], [0], [0], [1], [0, 0, 1, 1], [], []>} : vector<128x192xbf16>, vector<192x32xbf16>, vector<128x32xf32> -> vector<128x32xf32>
    %c0_18 = arith.constant 0 : index
    %c0_19 = arith.constant 0 : index
    %40 = vector.load %arg6[%c0_18, %c0_19] : memref<1x32xf32, #tpu.memory_space<vmem>>, vector<1x32xf32>
    %41 = vector.broadcast %40 : vector<1x32xf32> to vector<128x32xf32>
    %42 = arith.addf %39, %41 : vector<128x32xf32>
    %43 = vector.extract_strided_slice %42 {offsets = [0, 0], sizes = [8, 32], strides = [1, 1]} : vector<128x32xf32> to vector<8x32xf32>
    %44 = vector.extract_strided_slice %42 {offsets = [8, 0], sizes = [8, 32], strides = [1, 1]} : vector<128x32xf32> to vector<8x32xf32>
    %45 = vector.extract_strided_slice %42 {offsets = [16, 0], sizes = [8, 32], strides = [1, 1]} : vector<128x32xf32> to vector<8x32xf32>
    %46 = vector.extract_strided_slice %42 {offsets = [24, 0], sizes = [8, 32], strides = [1, 1]} : vector<128x32xf32> to vector<8x32xf32>
    %47 = vector.extract_strided_slice %42 {offsets = [32, 0], sizes = [8, 32], strides = [1, 1]} : vector<128x32xf32> to vector<8x32xf32>
    %48 = vector.extract_strided_slice %42 {offsets = [40, 0], sizes = [8, 32], strides = [1, 1]} : vector<128x32xf32> to vector<8x32xf32>
    %49 = vector.extract_strided_slice %42 {offsets = [48, 0], sizes = [8, 32], strides = [1, 1]} : vector<128x32xf32> to vector<8x32xf32>
    %50 = vector.extract_strided_slice %42 {offsets = [56, 0], sizes = [8, 32], strides = [1, 1]} : vector<128x32xf32> to vector<8x32xf32>
    %51 = vector.extract_strided_slice %42 {offsets = [64, 0], sizes = [8, 32], strides = [1, 1]} : vector<128x32xf32> to vector<8x32xf32>
    %52 = vector.extract_strided_slice %42 {offsets = [72, 0], sizes = [8, 32], strides = [1, 1]} : vector<128x32xf32> to vector<8x32xf32>
    %53 = vector.extract_strided_slice %42 {offsets = [80, 0], sizes = [8, 32], strides = [1, 1]} : vector<128x32xf32> to vector<8x32xf32>
    %54 = vector.extract_strided_slice %42 {offsets = [88, 0], sizes = [8, 32], strides = [1, 1]} : vector<128x32xf32> to vector<8x32xf32>
    %55 = vector.extract_strided_slice %42 {offsets = [96, 0], sizes = [8, 32], strides = [1, 1]} : vector<128x32xf32> to vector<8x32xf32>
    %56 = vector.extract_strided_slice %42 {offsets = [104, 0], sizes = [8, 32], strides = [1, 1]} : vector<128x32xf32> to vector<8x32xf32>
    %57 = vector.extract_strided_slice %42 {offsets = [112, 0], sizes = [8, 32], strides = [1, 1]} : vector<128x32xf32> to vector<8x32xf32>
    %58 = vector.extract_strided_slice %42 {offsets = [120, 0], sizes = [8, 32], strides = [1, 1]} : vector<128x32xf32> to vector<8x32xf32>
    %59 = tpu.concatenate %43, %44, %45, %46, %47, %48, %49, %50, %51, %52, %53, %54, %55, %56, %57, %58 in 1 : vector<8x32xf32>, vector<8x32xf32>, vector<8x32xf32>, vector<8x32xf32>, vector<8x32xf32>, vector<8x32xf32>, vector<8x32xf32>, vector<8x32xf32>, vector<8x32xf32>, vector<8x32xf32>, vector<8x32xf32>, vector<8x32xf32>, vector<8x32xf32>, vector<8x32xf32>, vector<8x32xf32>, vector<8x32xf32> -> vector<8x512xf32>
    %60 = arith.truncf %59 : vector<8x512xf32> to vector<8x512xbf16>
    %c0_20 = arith.constant 0 : index
    %c0_21 = arith.constant 0 : index
    %61 = vector.load %arg7[%c0_20, %c0_21] : memref<512x128xbf16, #tpu.memory_space<vmem>>, vector<512x128xbf16>
    %cst_22 = arith.constant dense<0.000000e+00> : vector<8x128xf32>
    %62 = tpu.matmul %60, %61, %cst_22 {dimension_numbers = #tpu.dot_dimension_numbers<[1], [0], [0], [1], [0, 0, 1, 1], [], []>} : vector<8x512xbf16>, vector<512x128xbf16>, vector<8x128xf32> -> vector<8x128xf32>
    %c0_23 = arith.constant 0 : index
    %c0_24 = arith.constant 0 : index
    %63 = vector.load %arg8[%c0_23, %c0_24] : memref<1x128xf32, #tpu.memory_space<vmem>>, vector<1x128xf32>
    %64 = vector.broadcast %63 : vector<1x128xf32> to vector<8x128xf32>
    %65 = arith.addf %62, %64 : vector<8x128xf32>
    %cst_25 = arith.constant 0.000000e+00 : f32
    %66 = vector.broadcast %cst_25 : f32 to vector<8x128xf32>
    %67 = arith.maximumf %65, %66 : vector<8x128xf32>
    %c0_26 = arith.constant 0 : index
    %c0_27 = arith.constant 0 : index
    %68 = vector.load %arg2[%c0_26, %c0_27] : memref<8x8xf32, #tpu.memory_space<vmem>>, vector<8x8xf32>
    %69 = tpu.concatenate %68, %67 in 1 : vector<8x8xf32>, vector<8x128xf32> -> vector<8x136xf32>
    %70 = arith.truncf %69 : vector<8x136xf32> to vector<8x136xbf16>
    %c0_28 = arith.constant 0 : index
    %c0_29 = arith.constant 0 : index
    %71 = vector.load %arg9[%c0_28, %c0_29] : memref<136x136xbf16, #tpu.memory_space<vmem>>, vector<136x136xbf16>
    %cst_30 = arith.constant dense<0.000000e+00> : vector<8x136xf32>
    %72 = tpu.matmul %70, %71, %cst_30 {dimension_numbers = #tpu.dot_dimension_numbers<[1], [0], [0], [1], [0, 0, 1, 1], [], []>} : vector<8x136xbf16>, vector<136x136xbf16>, vector<8x136xf32> -> vector<8x136xf32>
    %c0_31 = arith.constant 0 : index
    %c0_32 = arith.constant 0 : index
    %73 = vector.load %arg10[%c0_31, %c0_32] : memref<1x136xf32, #tpu.memory_space<vmem>>, vector<1x136xf32>
    %74 = vector.broadcast %73 : vector<1x136xf32> to vector<8x136xf32>
    %75 = arith.addf %72, %74 : vector<8x136xf32>
    %cst_33 = arith.constant 0.000000e+00 : f32
    %76 = vector.broadcast %cst_33 : f32 to vector<8x136xf32>
    %77 = arith.maximumf %75, %76 : vector<8x136xf32>
    %c0_34 = arith.constant 0 : index
    %c0_35 = arith.constant 0 : index
    %78 = vector.load %arg11[%c0_34, %c0_35] : memref<1x136xf32, #tpu.memory_space<vmem>>, vector<1x136xf32>
    %79 = vector.broadcast %78 : vector<1x136xf32> to vector<8x136xf32>
    %80 = arith.mulf %77, %79 : vector<8x136xf32>
    %cst_36 = arith.constant dense<0.000000e+00> : vector<8xf32>
    %81 = vector.multi_reduction <add>, %80, %cst_36 [1] : vector<8x136xf32> to vector<8xf32>
    %82 = vector.shape_cast %81 : vector<8xf32> to vector<8x1xf32>
    %c0_37 = arith.constant 0 : index
    %c0_38 = arith.constant 0 : index
    %83 = vector.load %arg12[%c0_37, %c0_38] : memref<1x1xf32, #tpu.memory_space<vmem>>, vector<1x1xf32>
    %84 = vector.broadcast %83 : vector<1x1xf32> to vector<8x1xf32>
    %85 = arith.addf %82, %84 : vector<8x1xf32>
    %c0_39 = arith.constant 0 : index
    %c0_40 = arith.constant 0 : index
    %86 = vector.load %arg13[%c0_39, %c0_40] : memref<8x1xf32, #tpu.memory_space<vmem>>, vector<8x1xf32>
    tpu.vector_store %arg13[%c0_39, %c0_40], %85 {strides = array<i32>} : memref<8x1xf32, #tpu.memory_space<vmem>>, vector<8x1xf32>,
    return
  }
  func.func @transform_0(%arg0: i32) -> (i32, i32, i32) {
    %c0_i32 = arith.constant 0 : i32
    %c0_i32_0 = arith.constant 0 : i32
    %c0_i32_1 = arith.constant 0 : i32
    return %c0_i32, %arg0, %c0_i32_0 : i32, i32, i32
  }
  func.func @transform_1(%arg0: i32) -> (i32, i32) {
    %c0_i32 = arith.constant 0 : i32
    %c0_i32_0 = arith.constant 0 : i32
    return %arg0, %c0_i32 : i32, i32
  }
  func.func @transform_2(%arg0: i32) -> (i32, i32) {
    %c0_i32 = arith.constant 0 : i32
    %c0_i32_0 = arith.constant 0 : i32
    %c0_i32_1 = arith.constant 0 : i32
    return %c0_i32, %c0_i32_0 : i32, i32
  }
  func.func @transform_3(%arg0: i32) -> (i32, i32) {
    %c0_i32 = arith.constant 0 : i32
    %c0_i32_0 = arith.constant 0 : i32
    %c0_i32_1 = arith.constant 0 : i32
    return %c0_i32, %c0_i32_0 : i32, i32
  }
  func.func @transform_4(%arg0: i32) -> (i32, i32) {
    %c0_i32 = arith.constant 0 : i32
    %c0_i32_0 = arith.constant 0 : i32
    %c0_i32_1 = arith.constant 0 : i32
    return %c0_i32, %c0_i32_0 : i32, i32
  }
  func.func @transform_5(%arg0: i32) -> (i32, i32) {
    %c0_i32 = arith.constant 0 : i32
    %c0_i32_0 = arith.constant 0 : i32
    %c0_i32_1 = arith.constant 0 : i32
    return %c0_i32, %c0_i32_0 : i32, i32
  }
  func.func @transform_6(%arg0: i32) -> (i32, i32) {
    %c0_i32 = arith.constant 0 : i32
    %c0_i32_0 = arith.constant 0 : i32
    %c0_i32_1 = arith.constant 0 : i32
    return %c0_i32, %c0_i32_0 : i32, i32
  }
  func.func @transform_7(%arg0: i32) -> (i32, i32) {
    %c0_i32 = arith.constant 0 : i32
    %c0_i32_0 = arith.constant 0 : i32
    %c0_i32_1 = arith.constant 0 : i32
    return %c0_i32, %c0_i32_0 : i32, i32
  }
  func.func @transform_8(%arg0: i32) -> (i32, i32) {
    %c0_i32 = arith.constant 0 : i32
    %c0_i32_0 = arith.constant 0 : i32
    %c0_i32_1 = arith.constant 0 : i32
    return %c0_i32, %c0_i32_0 : i32, i32
  }
  func.func @transform_9(%arg0: i32) -> (i32, i32) {
    %c0_i32 = arith.constant 0 : i32
    %c0_i32_0 = arith.constant 0 : i32
    %c0_i32_1 = arith.constant 0 : i32
    return %c0_i32, %c0_i32_0 : i32, i32
  }
  func.func @transform_10(%arg0: i32) -> (i32, i32) {
    %c0_i32 = arith.constant 0 : i32
    %c0_i32_0 = arith.constant 0 : i32
    %c0_i32_1 = arith.constant 0 : i32
    return %c0_i32, %c0_i32_0 : i32, i32
  }
  func.func @transform_11(%arg0: i32) -> (i32, i32) {
    %c0_i32 = arith.constant 0 : i32
    %c0_i32_0 = arith.constant 0 : i32
    %c0_i32_1 = arith.constant 0 : i32
    return %c0_i32, %c0_i32_0 : i32, i32
  }
  func.func @transform_12(%arg0: i32) -> (i32, i32) {
    %c0_i32 = arith.constant 0 : i32
    %c0_i32_0 = arith.constant 0 : i32
    return %arg0, %c0_i32 : i32, i32
  }
}

</mosaic_0001>

<llo_original>
// kernel: global_discriminator.1
$region0: #{global_discriminator.1}
  #allocation0 [shape = 'u32[]', space=smem, size = 0x4, offset = 0x4, fixed_abs, tag = 'smem constant byte address 0x4 - core index']
  #allocation1 [shape = 'u32[144,128]{1,0:T(1,128)}', space=vmem, size = 0x12000, scoped, tag = 'internal scratch']
  #allocation2 [shape = 'f32[1,1]{1,0:T(1,128)S(1)}', space=vmem, size = 0x200, scoped, tag = 'scoped memory for global_discriminator.1']
  %s0 = inlined_call_operand.vmem [shape: f32[16,16,4], index: 0, kind: input, shape index: {}]
  %s1 = inlined_call_operand.vmem [shape: f32[16,8], index: 1, kind: input, shape index: {}]
  %s2 = inlined_call_operand.vmem [shape: bf16[12,64], index: 2, kind: input, shape index: {}]
  %s3 = inlined_call_operand.vmem [shape: f32[1,64], index: 3, kind: input, shape index: {}]
  %s4 = inlined_call_operand.vmem [shape: bf16[192,32], index: 4, kind: input, shape index: {}]
  %s5 = inlined_call_operand.vmem [shape: f32[1,32], index: 5, kind: input, shape index: {}]
  %s6 = inlined_call_operand.vmem [shape: bf16[512,128], index: 6, kind: input, shape index: {}]
  %s7 = inlined_call_operand.vmem [shape: f32[1,128], index: 7, kind: input, shape index: {}]
  %s8 = inlined_call_operand.vmem [shape: bf16[136,136], index: 8, kind: input, shape index: {}]
  %s9 = inlined_call_operand.vmem [shape: f32[1,136], index: 9, kind: input, shape index: {}]
  %s10 = inlined_call_operand.vmem [shape: f32[1,136], index: 10, kind: input, shape index: {}]
  %s11 = inlined_call_operand.<no memory space> [shape: f32[1,1], index: 11, kind: input, shape index: {}]
  %s12 = inlined_call_operand.vmem [shape: f32[16,1], index: 12, kind: output, shape index: {}]
  %s13 = sld [smem:[#allocation0]]
  $region119: #{global_discriminator.1} parent=0
    _
  %s15 = ssub.s32 1, %s13
  %s16 = scalar_select 0, %s15, %s13
  %v17 = vstv %s11
  %18 = vst [vmem:[#allocation2] sm:$0x1] %v17
  $region1: #{global_discriminator.1} parent=0
    #allocation3 [shape = 'u8[131072]{0}', space=vmem, size = 0x20000, scoped, tag = 'input window, operand 0']
    loop: start=0, step=1, limit=4
    $region2: #{global_discriminator.1} parent=1 // loop_pre_header
      _
    $region3: #{global_discriminator.1} parent=1 // loop_header
      %s20 = sphi 0, %s24
      %p21 = scmp.ge.s32.totalorder %s20, 4
      %s30 = sphi 0, %s32
      %s33 = sphi 0, %s30
      %s34 = sphi 0, %s33
      %s50 = sphi 0, %s34
      %s56 = sphi 0, %s58
      %s59 = sphi 0, %s56
      %s60 = sphi 0, %s59
      %s76 = sphi 0, %s60
      %s80 = sphi 0, %s80
      %s82 = sphi 0, %s80
      %s83 = sphi 0, %s82
      %s97 = sphi 0, %s83
      %s101 = sphi 0, %s101
      %s103 = sphi 0, %s101
      %s104 = sphi 0, %s103
      %s118 = sphi 0, %s104
      %s122 = sphi 0, %s122
      %s124 = sphi 0, %s122
      %s125 = sphi 0, %s124
      %s139 = sphi 0, %s125
      %s143 = sphi 0, %s143
      %s145 = sphi 0, %s143
      %s146 = sphi 0, %s145
      %s160 = sphi 0, %s146
      %s164 = sphi 0, %s164
      %s166 = sphi 0, %s164
      %s167 = sphi 0, %s166
      %s181 = sphi 0, %s167
      %s185 = sphi 0, %s185
      %s187 = sphi 0, %s185
      %s188 = sphi 0, %s187
      %s202 = sphi 0, %s188
      %s206 = sphi 0, %s206
      %s208 = sphi 0, %s206
      %s209 = sphi 0, %s208
      %s223 = sphi 0, %s209
      %s227 = sphi 0, %s227
      %s229 = sphi 0, %s227
      %s230 = sphi 0, %s229
      %s244 = sphi 0, %s230
      %s248 = sphi 0, %s248
      %s250 = sphi 0, %s248
      %s251 = sphi 0, %s250
      %s265 = sphi 0, %s251
      %s269 = sphi 0, %s269
      %s271 = sphi 0, %s269
      %s272 = sphi 0, %s271
      %s286 = sphi 0, %s272
      %s292 = sphi 0, %s294
      %s295 = sphi 0, %s292
      %s296 = sphi 0, %s295
      %s312 = sphi 0, %s296
    $region4: #{global_discriminator.1} parent=1 // loop_header_branch
      %23 = sbr.rel (%p21) target = $region8
    $region5: #{global_discriminator.1} parent=1 // loop_body
      %s25 = ssub.s32 %s20, 1
      %s26 = ssub.s32 %s20, 2
      %s27 = sadd.s32 %s20, 1
      %s28 = ssub.s32 %s20, %s27
      %p29 = scmp.eq.s32.totalorder %s28, 0
      %s31 = sadd.s32 %s30, 1
      %s32 = scalar_select %p29, %s30, %s31
      %p35 = pneg %p29
      %p36 = scmp.eq.s32.totalorder %s20, 1
      %p37 = por %p35, %p36
      %p38 = scmp.ne.s32.totalorder %s30, %s33
      %p39 = scmp.eq.s32.totalorder %s20, 0
      %p40 = por %p38, %p39
      %p41 = scmp.ne.s32.totalorder %s30, %s33
      %p42 = scmp.eq.s32.totalorder %s25, 1
      %p43 = por %p41, %p42
      %p44 = scmp.ne.s32.totalorder %s33, %s34
      %p45 = scmp.eq.s32.totalorder %s25, 0
      %p46 = por %p44, %p45
      %p47 = scmp.ne.s32.totalorder %s33, %s34
      %p48 = scmp.eq.s32.totalorder %s26, 1
      %p49 = por %p47, %p48
      %p51 = scmp.ne.s32.totalorder %s34, %s50
      %p52 = scmp.eq.s32.totalorder %s26, 0
      %p53 = por %p51, %p52
      %s54 = ssub.s32 %s20, %s27
      %p55 = scmp.eq.s32.totalorder %s54, 0
      %s57 = sadd.s32 %s56, 1
      %s58 = scalar_select %p55, %s56, %s57
      %p61 = pneg %p55
      %p62 = scmp.eq.s32.totalorder %s20, 1
      %p63 = por %p61, %p62
      %p64 = scmp.ne.s32.totalorder %s56, %s59
      %p65 = scmp.eq.s32.totalorder %s20, 0
      %p66 = por %p64, %p65
      %p67 = scmp.ne.s32.totalorder %s56, %s59
      %p68 = scmp.eq.s32.totalorder %s25, 1
      %p69 = por %p67, %p68
      %p70 = scmp.ne.s32.totalorder %s59, %s60
      %p71 = scmp.eq.s32.totalorder %s25, 0
      %p72 = por %p70, %p71
      %p73 = scmp.ne.s32.totalorder %s59, %s60
      %p74 = scmp.eq.s32.totalorder %s26, 1
      %p75 = por %p73, %p74
      %p77 = scmp.ne.s32.totalorder %s60, %s76
      %p78 = scmp.eq.s32.totalorder %s26, 0
      %p79 = por %p77, %p78
      %s81 = sadd.s32 %s80, 1
      %p84 = scmp.eq.s32.totalorder %s20, 1
      %p85 = scmp.ne.s32.totalorder %s80, %s82
      %p86 = scmp.eq.s32.totalorder %s20, 0
      %p87 = por %p85, %p86
      %p88 = scmp.ne.s32.totalorder %s80, %s82
      %p89 = scmp.eq.s32.totalorder %s25, 1
      %p90 = por %p88, %p89
      %p91 = scmp.ne.s32.totalorder %s82, %s83
      %p92 = scmp.eq.s32.totalorder %s25, 0
      %p93 = por %p91, %p92
      %p94 = scmp.ne.s32.totalorder %s82, %s83
      %p95 = scmp.eq.s32.totalorder %s26, 1
      %p96 = por %p94, %p95
      %p98 = scmp.ne.s32.totalorder %s83, %s97
      %p99 = scmp.eq.s32.totalorder %s26, 0
      %p100 = por %p98, %p99
      %s102 = sadd.s32 %s101, 1
      %p105 = scmp.eq.s32.totalorder %s20, 1
      %p106 = scmp.ne.s32.totalorder %s101, %s103
      %p107 = scmp.eq.s32.totalorder %s20, 0
      %p108 = por %p106, %p107
      %p109 = scmp.ne.s32.totalorder %s101, %s103
      %p110 = scmp.eq.s32.totalorder %s25, 1
      %p111 = por %p109, %p110
      %p112 = scmp.ne.s32.totalorder %s103, %s104
      %p113 = scmp.eq.s32.totalorder %s25, 0
      %p114 = por %p112, %p113
      %p115 = scmp.ne.s32.totalorder %s103, %s104
      %p116 = scmp.eq.s32.totalorder %s26, 1
      %p117 = por %p115, %p116
      %p119 = scmp.ne.s32.totalorder %s104, %s118
      %p120 = scmp.eq.s32.totalorder %s26, 0
      %p121 = por %p119, %p120
      %s123 = sadd.s32 %s122, 1
      %p126 = scmp.eq.s32.totalorder %s20, 1
      %p127 = scmp.ne.s32.totalorder %s122, %s124
      %p128 = scmp.eq.s32.totalorder %s20, 0
      %p129 = por %p127, %p128
      %p130 = scmp.ne.s32.totalorder %s122, %s124
      %p131 = scmp.eq.s32.totalorder %s25, 1
      %p132 = por %p130, %p131
      %p133 = scmp.ne.s32.totalorder %s124, %s125
      %p134 = scmp.eq.s32.totalorder %s25, 0
      %p135 = por %p133, %p134
      %p136 = scmp.ne.s32.totalorder %s124, %s125
      %p137 = scmp.eq.s32.totalorder %s26, 1
      %p138 = por %p136, %p137
      %p140 = scmp.ne.s32.totalorder %s125, %s139
      %p141 = scmp.eq.s32.totalorder %s26, 0
      %p142 = por %p140, %p141
      %s144 = sadd.s32 %s143, 1
      %p147 = scmp.eq.s32.totalorder %s20, 1
      %p148 = scmp.ne.s32.totalorder %s143, %s145
      %p149 = scmp.eq.s32.totalorder %s20, 0
      %p150 = por %p148, %p149
      %p151 = scmp.ne.s32.totalorder %s143, %s145
      %p152 = scmp.eq.s32.totalorder %s25, 1
      %p153 = por %p151, %p152
      %p154 = scmp.ne.s32.totalorder %s145, %s146
      %p155 = scmp.eq.s32.totalorder %s25, 0
      %p156 = por %p154, %p155
      %p157 = scmp.ne.s32.totalorder %s145, %s146
      %p158 = scmp.eq.s32.totalorder %s26, 1
      %p159 = por %p157, %p158
      %p161 = scmp.ne.s32.totalorder %s146, %s160
      %p162 = scmp.eq.s32.totalorder %s26, 0
      %p163 = por %p161, %p162
      %s165 = sadd.s32 %s164, 1
      %p168 = scmp.eq.s32.totalorder %s20, 1
      %p169 = scmp.ne.s32.totalorder %s164, %s166
      %p170 = scmp.eq.s32.totalorder %s20, 0
      %p171 = por %p169, %p170
      %p172 = scmp.ne.s32.totalorder %s164, %s166
      %p173 = scmp.eq.s32.totalorder %s25, 1
      %p174 = por %p172, %p173
      %p175 = scmp.ne.s32.totalorder %s166, %s167
      %p176 = scmp.eq.s32.totalorder %s25, 0
      %p177 = por %p175, %p176
      %p178 = scmp.ne.s32.totalorder %s166, %s167
      %p179 = scmp.eq.s32.totalorder %s26, 1
      %p180 = por %p178, %p179
      %p182 = scmp.ne.s32.totalorder %s167, %s181
      %p183 = scmp.eq.s32.totalorder %s26, 0
      %p184 = por %p182, %p183
      %s186 = sadd.s32 %s185, 1
      %p189 = scmp.eq.s32.totalorder %s20, 1
      %p190 = scmp.ne.s32.totalorder %s185, %s187
      %p191 = scmp.eq.s32.totalorder %s20, 0
      %p192 = por %p190, %p191
      %p193 = scmp.ne.s32.totalorder %s185, %s187
      %p194 = scmp.eq.s32.totalorder %s25, 1
      %p195 = por %p193, %p194
      %p196 = scmp.ne.s32.totalorder %s187, %s188
      %p197 = scmp.eq.s32.totalorder %s25, 0
      %p198 = por %p196, %p197
      %p199 = scmp.ne.s32.totalorder %s187, %s188
      %p200 = scmp.eq.s32.totalorder %s26, 1
      %p201 = por %p199, %p200
      %p203 = scmp.ne.s32.totalorder %s188, %s202
      %p204 = scmp.eq.s32.totalorder %s26, 0
      %p205 = por %p203, %p204
      %s207 = sadd.s32 %s206, 1
      %p210 = scmp.eq.s32.totalorder %s20, 1
      %p211 = scmp.ne.s32.totalorder %s206, %s208
      %p212 = scmp.eq.s32.totalorder %s20, 0
      %p213 = por %p211, %p212
      %p214 = scmp.ne.s32.totalorder %s206, %s208
      %p215 = scmp.eq.s32.totalorder %s25, 1
      %p216 = por %p214, %p215
      %p217 = scmp.ne.s32.totalorder %s208, %s209
      %p218 = scmp.eq.s32.totalorder %s25, 0
      %p219 = por %p217, %p218
      %p220 = scmp.ne.s32.totalorder %s208, %s209
      %p221 = scmp.eq.s32.totalorder %s26, 1
      %p222 = por %p220, %p221
      %p224 = scmp.ne.s32.totalorder %s209, %s223
      %p225 = scmp.eq.s32.totalorder %s26, 0
      %p226 = por %p224, %p225
      %s228 = sadd.s32 %s227, 1
      %p231 = scmp.eq.s32.totalorder %s20, 1
      %p232 = scmp.ne.s32.totalorder %s227, %s229
      %p233 = scmp.eq.s32.totalorder %s20, 0
      %p234 = por %p232, %p233
      %p235 = scmp.ne.s32.totalorder %s227, %s229
      %p236 = scmp.eq.s32.totalorder %s25, 1
      %p237 = por %p235, %p236
      %p238 = scmp.ne.s32.totalorder %s229, %s230
      %p239 = scmp.eq.s32.totalorder %s25, 0
      %p240 = por %p238, %p239
      %p241 = scmp.ne.s32.totalorder %s229, %s230
      %p242 = scmp.eq.s32.totalorder %s26, 1
      %p243 = por %p241, %p242
      %p245 = scmp.ne.s32.totalorder %s230, %s244
      %p246 = scmp.eq.s32.totalorder %s26, 0
      %p247 = por %p245, %p246
      %s249 = sadd.s32 %s248, 1
      %p252 = scmp.eq.s32.totalorder %s20, 1
      %p253 = scmp.ne.s32.totalorder %s248, %s250
      %p254 = scmp.eq.s32.totalorder %s20, 0
      %p255 = por %p253, %p254
      %p256 = scmp.ne.s32.totalorder %s248, %s250
      %p257 = scmp.eq.s32.totalorder %s25, 1
      %p258 = por %p256, %p257
      %p259 = scmp.ne.s32.totalorder %s250, %s251
      %p260 = scmp.eq.s32.totalorder %s25, 0
      %p261 = por %p259, %p260
      %p262 = scmp.ne.s32.totalorder %s250, %s251
      %p263 = scmp.eq.s32.totalorder %s26, 1
      %p264 = por %p262, %p263
      %p266 = scmp.ne.s32.totalorder %s251, %s265
      %p267 = scmp.eq.s32.totalorder %s26, 0
      %p268 = por %p266, %p267
      %s270 = sadd.s32 %s269, 1
      %p273 = scmp.eq.s32.totalorder %s20, 1
      %p274 = scmp.ne.s32.totalorder %s269, %s271
      %p275 = scmp.eq.s32.totalorder %s20, 0
      %p276 = por %p274, %p275
      %p277 = scmp.ne.s32.totalorder %s269, %s271
      %p278 = scmp.eq.s32.totalorder %s25, 1
      %p279 = por %p277, %p278
      %p280 = scmp.ne.s32.totalorder %s271, %s272
      %p281 = scmp.eq.s32.totalorder %s25, 0
      %p282 = por %p280, %p281
      %p283 = scmp.ne.s32.totalorder %s271, %s272
      %p284 = scmp.eq.s32.totalorder %s26, 1
      %p285 = por %p283, %p284
      %p287 = scmp.ne.s32.totalorder %s272, %s286
      %p288 = scmp.eq.s32.totalorder %s26, 0
      %p289 = por %p287, %p288
      %s290 = ssub.s32 %s20, %s27
      %p291 = scmp.eq.s32.totalorder %s290, 0
      %s293 = sadd.s32 %s292, 1
      %s294 = scalar_select %p291, %s292, %s293
      %p297 = pneg %p291
      %p298 = scmp.eq.s32.totalorder %s20, 1
      %p299 = por %p297, %p298
      %p300 = scmp.ne.s32.totalorder %s292, %s295
      %p301 = scmp.eq.s32.totalorder %s20, 0
      %p302 = por %p300, %p301
      %p303 = scmp.ne.s32.totalorder %s292, %s295
      %p304 = scmp.eq.s32.totalorder %s25, 1
      %p305 = por %p303, %p304
      %p306 = scmp.ne.s32.totalorder %s295, %s296
      %p307 = scmp.eq.s32.totalorder %s25, 0
      %p308 = por %p306, %p307
      %p309 = scmp.ne.s32.totalorder %s295, %s296
      %p310 = scmp.eq.s32.totalorder %s26, 1
      %p311 = por %p309, %p310
      %p313 = scmp.ne.s32.totalorder %s296, %s312
      %p314 = scmp.eq.s32.totalorder %s26, 0
      %p315 = por %p313, %p314
      %p316 = scmp.le.s32.totalorder 1, %s20
      %p317 = scmp.lt.s32.totalorder %s20, 3
      %p318 = pnand %p316, %p317
      %p319 = pneg %p318
      // Predicated region
      $region9: #{global_discriminator.1} parent=5 // pred_check
        _
      $region10: #{global_discriminator.1} parent=5 // pred_check_branch
        %321 = sbr.rel (%p318) target = $region12
      $region11: #{global_discriminator.1} parent=5 // pred_region
        %s322 = ssub.s32 %s20, 1
        // Predicated region
        $region13: #{global_discriminator.1} parent=11 // pred_check
          %p323 = pneg %p93
        $region14: #{global_discriminator.1} parent=11 // pred_check_branch
          %325 = sbr.rel (%p323) target = $region16
        $region15: #{global_discriminator.1} parent=11 // pred_region
          _
        $region16: #{global_discriminator.1} parent=11 // pred_fallthru
          _
        // Predicated region
        $region17: #{global_discriminator.1} parent=11 // pred_check
          %p326 = pneg %p114
        $region18: #{global_discriminator.1} parent=11 // pred_check_branch
          %328 = sbr.rel (%p326) target = $region20
        $region19: #{global_discriminator.1} parent=11 // pred_region
          _
        $region20: #{global_discriminator.1} parent=11 // pred_fallthru
          _
        // Predicated region
        $region21: #{global_discriminator.1} parent=11 // pred_check
          %p329 = pneg %p135
        $region22: #{global_discriminator.1} parent=11 // pred_check_branch
          %331 = sbr.rel (%p329) target = $region24
        $region23: #{global_discriminator.1} parent=11 // pred_region
          _
        $region24: #{global_discriminator.1} parent=11 // pred_fallthru
          _
        // Predicated region
        $region25: #{global_discriminator.1} parent=11 // pred_check
          %p332 = pneg %p156
        $region26: #{global_discriminator.1} parent=11 // pred_check_branch
          %334 = sbr.rel (%p332) target = $region28
        $region27: #{global_discriminator.1} parent=11 // pred_region
          _
        $region28: #{global_discriminator.1} parent=11 // pred_fallthru
          _
        // Predicated region
        $region29: #{global_discriminator.1} parent=11 // pred_check
          %p335 = pneg %p177
        $region30: #{global_discriminator.1} parent=11 // pred_check_branch
          %337 = sbr.rel (%p335) target = $region32
        $region31: #{global_discriminator.1} parent=11 // pred_region
          _
        $region32: #{global_discriminator.1} parent=11 // pred_fallthru
          _
        // Predicated region
        $region33: #{global_discriminator.1} parent=11 // pred_check
          %p338 = pneg %p198
        $region34: #{global_discriminator.1} parent=11 // pred_check_branch
          %340 = sbr.rel (%p338) target = $region36
        $region35: #{global_discriminator.1} parent=11 // pred_region
          _
        $region36: #{global_discriminator.1} parent=11 // pred_fallthru
          _
        // Predicated region
        $region37: #{global_discriminator.1} parent=11 // pred_check
          %p341 = pneg %p219
        $region38: #{global_discriminator.1} parent=11 // pred_check_branch
          %343 = sbr.rel (%p341) target = $region40
        $region39: #{global_discriminator.1} parent=11 // pred_region
          _
        $region40: #{global_discriminator.1} parent=11 // pred_fallthru
          _
        // Predicated region
        $region41: #{global_discriminator.1} parent=11 // pred_check
          %p344 = pneg %p240
        $region42: #{global_discriminator.1} parent=11 // pred_check_branch
          %346 = sbr.rel (%p344) target = $region44
        $region43: #{global_discriminator.1} parent=11 // pred_region
          _
        $region44: #{global_discriminator.1} parent=11 // pred_fallthru
          _
        // Predicated region
        $region45: #{global_discriminator.1} parent=11 // pred_check
          %p347 = pneg %p261
        $region46: #{global_discriminator.1} parent=11 // pred_check_branch
          %349 = sbr.rel (%p347) target = $region48
        $region47: #{global_discriminator.1} parent=11 // pred_region
          _
        $region48: #{global_discriminator.1} parent=11 // pred_fallthru
          _
        // Predicated region
        $region49: #{global_discriminator.1} parent=11 // pred_check
          %p350 = pneg %p282
        $region50: #{global_discriminator.1} parent=11 // pred_check_branch
          %352 = sbr.rel (%p350) target = $region52
        $region51: #{global_discriminator.1} parent=11 // pred_region
          _
        $region52: #{global_discriminator.1} parent=11 // pred_fallthru
          _
      $region12: #{global_discriminator.1} parent=5 // pred_fallthru
        _
      %p353 = scmp.lt.s32.totalorder %s20, 2
      // Predicated region
      $region53: #{global_discriminator.1} parent=5 // pred_check
        %p354 = pneg %p353
      $region54: #{global_discriminator.1} parent=5 // pred_check_branch
        %356 = sbr.rel (%p354) target = $region56
      $region55: #{global_discriminator.1} parent=5 // pred_region
        // Predicated region
        $region57: #{global_discriminator.1} parent=55 // pred_check
          %p357 = pneg %p40
        $region58: #{global_discriminator.1} parent=55 // pred_check_branch
          %359 = sbr.rel (%p357) target = $region60
        $region59: #{global_discriminator.1} parent=55 // pred_region
          %s360 = sand.u32 %s30, 1
          %s361 = sand.u32 %s30, 1
          %s362 = smul.addr %s361, 128
          %s363 = scalar_lea.vmem [#allocation3], %s362
          %s364 = smul.addr %s20, 8
          %s365 = scalar_lea.vmem %s0, %s364
          // Predicated region
          $region61: #{global_discriminator.1} parent=59 // pred_check
            _
          $region62: #{global_discriminator.1} parent=59 // pred_check_branch
            %367 = sbr.rel (0) target = $region64
          $region63: #{global_discriminator.1} parent=59 // pred_region
            // Predicated region
            $region65: #{global_discriminator.1} parent=63 // pred_check
              _
            $region66: #{global_discriminator.1} parent=63 // pred_check_branch
              %369 = sbr.rel (0) target = $region68
            $region67: #{global_discriminator.1} parent=63 // pred_region
              // Predicated region
              $region80: #{global_discriminator.1} parent=67 // pred_check
                _
              $region81: #{global_discriminator.1} parent=67 // pred_check_branch
                %415 = sbr.rel (0) target = $region83
              $region82: #{global_discriminator.1} parent=67 // pred_region
                loop: start=0, step=1, limit=1
                $region84: #{global_discriminator.1} parent=82 // loop_pre_header
                  _
                $region85: #{global_discriminator.1} parent=82 // loop_header
                  %s417 = sphi 0, %s421
                  %p418 = scmp.ge.s32.totalorder %s417, 1
                  %s422 = sphi %s365, %s365
                  %s423 = sphi %s363, %s363
                $region86: #{global_discriminator.1} parent=82 // loop_header_branch
                  %420 = sbr.rel (%p418) target = $region90
                $region87: #{global_discriminator.1} parent=82 // loop_body
                  %v424 = vld [vmem:[%s422] sm:$0xff]
                  %425 = vst [vmem:[%s423] sm:$0xff] %v424
                  %v426 = vld [vmem:[%s422 + $0x10] sm:$0xff]
                  %427 = vst [vmem:[%s423 + $0x8] sm:$0xff] %v426
                  %v428 = vld [vmem:[%s422 + $0x20] sm:$0xff]
                  %429 = vst [vmem:[%s423 + $0x10] sm:$0xff] %v428
                  %v430 = vld [vmem:[%s422 + $0x30] sm:$0xff]
                  %431 = vst [vmem:[%s423 + $0x18] sm:$0xff] %v430
                  %v432 = vld [vmem:[%s422 + $0x40] sm:$0xff]
                  %433 = vst [vmem:[%s423 + $0x20] sm:$0xff] %v432
                  %v434 = vld [vmem:[%s422 + $0x50] sm:$0xff]
                  %435 = vst [vmem:[%s423 + $0x28] sm:$0xff] %v434
                  %v436 = vld [vmem:[%s422 + $0x60] sm:$0xff]
                  %437 = vst [vmem:[%s423 + $0x30] sm:$0xff] %v436
                  %v438 = vld [vmem:[%s422 + $0x70] sm:$0xff]
                  %439 = vst [vmem:[%s423 + $0x38] sm:$0xff] %v438
                  %v440 = vld [vmem:[%s422 + $0x80] sm:$0xff]
                  %441 = vst [vmem:[%s423 + $0x40] sm:$0xff] %v440
                  %v442 = vld [vmem:[%s422 + $0x90] sm:$0xff]
                  %443 = vst [vmem:[%s423 + $0x48] sm:$0xff] %v442
                  %v444 = vld [vmem:[%s422 + $0xa0] sm:$0xff]
                  %445 = vst [vmem:[%s423 + $0x50] sm:$0xff] %v444
                  %v446 = vld [vmem:[%s422 + $0xb0] sm:$0xff]
                  %447 = vst [vmem:[%s423 + $0x58] sm:$0xff] %v446
                  %v448 = vld [vmem:[%s422 + $0xc0] sm:$0xff]
                  %449 = vst [vmem:[%s423 + $0x60] sm:$0xff] %v448
                  %v450 = vld [vmem:[%s422 + $0xd0] sm:$0xff]
                  %451 = vst [vmem:[%s423 + $0x68] sm:$0xff] %v450
                  %v452 = vld [vmem:[%s422 + $0xe0] sm:$0xff]
                  %453 = vst [vmem:[%s423 + $0x70] sm:$0xff] %v452
                  %v454 = vld [vmem:[%s422 + $0xf0] sm:$0xff]
                  %455 = vst [vmem:[%s423 + $0x78] sm:$0xff] %v454
                $region88: #{global_discriminator.1} parent=82 // loop_footer
                  %s421 = sadd.s32 1, %s417
                $region89: #{global_discriminator.1} parent=82 // loop_footer_branch
                  %416 = sbr.rel target = $region85
                $region90: #{global_discriminator.1} parent=82 // loop_exit
                  _
              $region83: #{global_discriminator.1} parent=67 // pred_fallthru
                _
              // Predicated region
              $region91: #{global_discriminator.1} parent=67 // pred_check
                _
              $region92: #{global_discriminator.1} parent=67 // pred_check_branch
                %457 = sbr.rel target = $region94
              $region93: #{global_discriminator.1} parent=67 // pred_region
                _
              $region94: #{global_discriminator.1} parent=67 // pred_fallthru
                _
            $region68: #{global_discriminator.1} parent=63 // pred_fallthru
              _
            // Predicated region
            $region69: #{global_discriminator.1} parent=63 // pred_check
              _
            $region70: #{global_discriminator.1} parent=63 // pred_check_branch
              %371 = sbr.rel target = $region72
            $region71: #{global_discriminator.1} parent=63 // pred_region
              %s373 = ssub.s32 256, 1
              loop: start=0, step=1, limit=1
              $region73: #{global_discriminator.1} parent=71 // loop_pre_header
                _
              $region74: #{global_discriminator.1} parent=71 // loop_header
                %s375 = sphi 0, %s379
                %p376 = scmp.ge.s32.totalorder %s375, 1
                %s380 = sphi %s365, %s365
                %s381 = sphi %s363, %s363
              $region75: #{global_discriminator.1} parent=71 // loop_header_branch
                %378 = sbr.rel (%p376) target = $region79
              $region76: #{global_discriminator.1} parent=71 // loop_body
                %v382 = vld [vmem:[%s380] sm:%s373]
                %383 = vst [vmem:[%s381] sm:%s373] %v382
                %v384 = vld [vmem:[%s380 + $0x10] sm:%s373]
                %385 = vst [vmem:[%s381 + $0x8] sm:%s373] %v384
                %v386 = vld [vmem:[%s380 + $0x20] sm:%s373]
                %387 = vst [vmem:[%s381 + $0x10] sm:%s373] %v386
                %v388 = vld [vmem:[%s380 + $0x30] sm:%s373]
                %389 = vst [vmem:[%s381 + $0x18] sm:%s373] %v388
                %v390 = vld [vmem:[%s380 + $0x40] sm:%s373]
                %391 = vst [vmem:[%s381 + $0x20] sm:%s373] %v390
                %v392 = vld [vmem:[%s380 + $0x50] sm:%s373]
                %393 = vst [vmem:[%s381 + $0x28] sm:%s373] %v392
                %v394 = vld [vmem:[%s380 + $0x60] sm:%s373]
                %395 = vst [vmem:[%s381 + $0x30] sm:%s373] %v394
                %v396 = vld [vmem:[%s380 + $0x70] sm:%s373]
                %397 = vst [vmem:[%s381 + $0x38] sm:%s373] %v396
                %v398 = vld [vmem:[%s380 + $0x80] sm:%s373]
                %399 = vst [vmem:[%s381 + $0x40] sm:%s373] %v398
                %v400 = vld [vmem:[%s380 + $0x90] sm:%s373]
                %401 = vst [vmem:[%s381 + $0x48] sm:%s373] %v400
                %v402 = vld [vmem:[%s380 + $0xa0] sm:%s373]
                %403 = vst [vmem:[%s381 + $0x50] sm:%s373] %v402
                %v404 = vld [vmem:[%s380 + $0xb0] sm:%s373]
                %405 = vst [vmem:[%s381 + $0x58] sm:%s373] %v404
                %v406 = vld [vmem:[%s380 + $0xc0] sm:%s373]
                %407 = vst [vmem:[%s381 + $0x60] sm:%s373] %v406
                %v408 = vld [vmem:[%s380 + $0xd0] sm:%s373]
                %409 = vst [vmem:[%s381 + $0x68] sm:%s373] %v408
                %v410 = vld [vmem:[%s380 + $0xe0] sm:%s373]
                %411 = vst [vmem:[%s381 + $0x70] sm:%s373] %v410
                %v412 = vld [vmem:[%s380 + $0xf0] sm:%s373]
                %413 = vst [vmem:[%s381 + $0x78] sm:%s373] %v412
              $region77: #{global_discriminator.1} parent=71 // loop_footer
                %s379 = sadd.s32 1, %s375
              $region78: #{global_discriminator.1} parent=71 // loop_footer_branch
                %374 = sbr.rel target = $region74
              $region79: #{global_discriminator.1} parent=71 // loop_exit
                _
            $region72: #{global_discriminator.1} parent=63 // pred_fallthru
              _
          $region64: #{global_discriminator.1} parent=59 // pred_fallthru
            _
          %458 = vnop
        $region60: #{global_discriminator.1} parent=55 // pred_fallthru
          _
        // Predicated region
        $region95: #{global_discriminator.1} parent=55 // pred_check
          %p459 = pneg %p66
        $region96: #{global_discriminator.1} parent=55 // pred_check_branch
          %461 = sbr.rel (%p459) target = $region98
        $region97: #{global_discriminator.1} parent=55 // pred_region
          %p462 = scmp.lt.s32.totalorder %s20, 1
          %s463 = scalar_select %p462, %s20, 1
          %s464 = smul.addr %s463, 8
          %s465 = scalar_lea.vmem %s1, %s464
        $region98: #{global_discriminator.1} parent=55 // pred_fallthru
          _
      $region56: #{global_discriminator.1} parent=5 // pred_fallthru
        _
      %p466 = scmp.le.s32.totalorder 1, %s20
      %p467 = scmp.lt.s32.totalorder %s20, 3
      %p468 = pnand %p466, %p467
      %p469 = pneg %p468
      // Predicated region
      $region99: #{global_discriminator.1} parent=5 // pred_check
        _
      $region100: #{global_discriminator.1} parent=5 // pred_check_branch
        %471 = sbr.rel (%p468) target = $region102
      $region101: #{global_discriminator.1} parent=5 // pred_region
        %s472 = ssub.s32 %s20, 1
        %s473 = sand.u32 %s33, 1
        %s474 = sand.u32 %s33, 1
        %s475 = smul.addr %s474, 128
        %s476 = scalar_lea.vmem [#allocation3], %s475
        // Predicated region
        $region103: #{global_discriminator.1} parent=101 // pred_check
          %p477 = pneg %p46
        $region104: #{global_discriminator.1} parent=101 // pred_check_branch
          %479 = sbr.rel (%p477) target = $region106
        $region105: #{global_discriminator.1} parent=101 // pred_region
          _
        $region106: #{global_discriminator.1} parent=101 // pred_fallthru
          _
        %s480 = sand.u32 %s33, 1
        %s481 = sand.u32 %s33, 1
        %s482 = smul.addr %s481, 128
        %s483 = scalar_lea.vmem [#allocation3], %s482
        %p484 = pneg %p46
        %p485 = pneg %p43
        %p486 = scmp.lt.s32.totalorder %s25, 1
        %s487 = scalar_select %p486, %s25, 1
        %s488 = smul.addr %s487, 8
        %s489 = scalar_lea.vmem %s1, %s488
        %p490 = pneg %p72
        %p491 = pneg %p69
        %p492 = pneg %p93
        %p493 = pneg %p90
        %p494 = pneg %p114
        %p495 = pneg %p111
        %p496 = pneg %p135
        %p497 = pneg %p132
        %p498 = pneg %p156
        %p499 = pneg %p153
        %p500 = pneg %p177
        %p501 = pneg %p174
        %p502 = pneg %p198
        %p503 = pneg %p195
        %p504 = pneg %p219
        %p505 = pneg %p216
        %p506 = pneg %p240
        %p507 = pneg %p237
        %p508 = pneg %p261
        %p509 = pneg %p258
        %p510 = pneg %p282
        %p511 = pneg %p279
        %p512 = pneg %p308
        %p513 = pneg %p305
        %p514 = scmp.lt.s32.totalorder %s25, 1
        %s515 = scalar_select %p514, %s25, 1
        %s516 = smul.addr %s515, 8
        %s517 = scalar_lea.vmem %s12, %s516
        %p518 = scmp.lt.s32.totalorder %s25, 1
        %s519 = scalar_select %p518, %s25, 1
        %s520 = smul.addr %s519, 8
        %s521 = scalar_lea.vmem %s1, %s520
        %p522 = scmp.lt.s32.totalorder %s25, 1
        %s523 = scalar_select %p522, %s25, 1
        %s524 = smul.addr %s523, 8
        %s525 = scalar_lea.vmem %s12, %s524
        %v527 = vld [vmem:[%s476] sm:$0xff]
        %v528 = vld [vmem:[%s476 + $0x8] sm:$0xff]
        %v529 = vld [vmem:[%s476 + $0x10] sm:$0xff]
        %v530 = vld [vmem:[%s476 + $0x18] sm:$0xff]
        %v531 = vld [vmem:[%s476 + $0x20] sm:$0xff]
        %v532 = vld [vmem:[%s476 + $0x28] sm:$0xff]
        %v533 = vld [vmem:[%s476 + $0x30] sm:$0xff]
        %v534 = vld [vmem:[%s476 + $0x38] sm:$0xff]
        %v535 = vld [vmem:[%s476 + $0x40] sm:$0xff]
        %v536 = vld [vmem:[%s476 + $0x48] sm:$0xff]
        %v537 = vld [vmem:[%s476 + $0x50] sm:$0xff]
        %v538 = vld [vmem:[%s476 + $0x58] sm:$0xff]
        %v539 = vld [vmem:[%s476 + $0x60] sm:$0xff]
        %v540 = vld [vmem:[%s476 + $0x68] sm:$0xff]
        %v541 = vld [vmem:[%s476 + $0x70] sm:$0xff]
        %v542 = vld [vmem:[%s476 + $0x78] sm:$0xff]
        %v543 = vlaneseq
        %v544 = vshrl.u32 %v543, 7
        %v545 = vadd.s32 %v544, 8
        %v546 = vadd.s32 %v544, 16
        %v547 = vadd.s32 %v544, 24
        %v548 = vadd.s32 %v544, 32
        %v549 = vadd.s32 %v544, 40
        %v550 = vadd.s32 %v544, 48
        %v551 = vadd.s32 %v544, 56
        %v552 = vadd.s32 %v544, 64
        %v553 = vadd.s32 %v544, 72
        %v554 = vadd.s32 %v544, 80
        %v555 = vadd.s32 %v544, 88
        %v556 = vadd.s32 %v544, 96
        %v557 = vadd.s32 %v544, 104
        %v558 = vadd.s32 %v544, 112
        %v559 = vadd.s32 %v544, 120
        %vm560 = vcmp.ge.s32.totalorder %v544, 8
        %vm561 = vcmp.ge.s32.totalorder %v545, 8
        %vm562 = vcmp.ge.s32.totalorder %v546, 8
        %vm563 = vcmp.ge.s32.totalorder %v547, 8
        %vm564 = vcmp.ge.s32.totalorder %v548, 8
        %vm565 = vcmp.ge.s32.totalorder %v549, 8
        %vm566 = vcmp.ge.s32.totalorder %v550, 8
        %vm567 = vcmp.ge.s32.totalorder %v551, 8
        %vm568 = vcmp.ge.s32.totalorder %v552, 8
        %vm569 = vcmp.ge.s32.totalorder %v553, 8
        %vm570 = vcmp.ge.s32.totalorder %v554, 8
        %vm571 = vcmp.ge.s32.totalorder %v555, 8
        %vm572 = vcmp.ge.s32.totalorder %v556, 8
        %vm573 = vcmp.ge.s32.totalorder %v557, 8
        %vm574 = vcmp.ge.s32.totalorder %v558, 8
        %vm575 = vcmp.ge.s32.totalorder %v559, 8
        %vm576 = vcmp.lt.s32.totalorder %v544, 120
        %vm577 = vcmp.lt.s32.totalorder %v545, 120
        %vm578 = vcmp.lt.s32.totalorder %v546, 120
        %vm579 = vcmp.lt.s32.totalorder %v547, 120
        %vm580 = vcmp.lt.s32.totalorder %v548, 120
        %vm581 = vcmp.lt.s32.totalorder %v549, 120
        %vm582 = vcmp.lt.s32.totalorder %v550, 120
        %vm583 = vcmp.lt.s32.totalorder %v551, 120
        %vm584 = vcmp.lt.s32.totalorder %v552, 120
        %vm585 = vcmp.lt.s32.totalorder %v553, 120
        %vm586 = vcmp.lt.s32.totalorder %v554, 120
        %vm587 = vcmp.lt.s32.totalorder %v555, 120
        %vm588 = vcmp.lt.s32.totalorder %v556, 120
        %vm589 = vcmp.lt.s32.totalorder %v557, 120
        %vm590 = vcmp.lt.s32.totalorder %v558, 120
        %vm591 = vcmp.lt.s32.totalorder %v559, 120
        %v592 = vsel %vm560, 1, 0
        %v593 = vsel %vm561, 1, 0
        %v594 = vsel %vm562, 1, 0
        %v595 = vsel %vm563, 1, 0
        %v596 = vsel %vm564, 1, 0
        %v597 = vsel %vm565, 1, 0
        %v598 = vsel %vm566, 1, 0
        %v599 = vsel %vm567, 1, 0
        %v600 = vsel %vm568, 1, 0
        %v601 = vsel %vm569, 1, 0
        %v602 = vsel %vm570, 1, 0
        %v603 = vsel %vm571, 1, 0
        %v604 = vsel %vm572, 1, 0
        %v605 = vsel %vm573, 1, 0
        %v606 = vsel %vm574, 1, 0
        %v607 = vsel %vm575, 1, 0
        %vm608 = vcmp.eq.s32.totalorder %v592, 1
        %vm609 = vcmp.eq.s32.totalorder %v593, 1
        %vm610 = vcmp.eq.s32.totalorder %v594, 1
        %vm611 = vcmp.eq.s32.totalorder %v595, 1
        %vm612 = vcmp.eq.s32.totalorder %v596, 1
        %vm613 = vcmp.eq.s32.totalorder %v597, 1
        %vm614 = vcmp.eq.s32.totalorder %v598, 1
        %vm615 = vcmp.eq.s32.totalorder %v599, 1
        %vm616 = vcmp.eq.s32.totalorder %v600, 1
        %vm617 = vcmp.eq.s32.totalorder %v601, 1
        %vm618 = vcmp.eq.s32.totalorder %v602, 1
        %vm619 = vcmp.eq.s32.totalorder %v603, 1
        %vm620 = vcmp.eq.s32.totalorder %v604, 1
        %vm621 = vcmp.eq.s32.totalorder %v605, 1
        %vm622 = vcmp.eq.s32.totalorder %v606, 1
        %vm623 = vcmp.eq.s32.totalorder %v607, 1
        %v624 = vsel %vm608, %v542, 0.0
        %v625 = vsel %vm609, %v527, 0.0
        %v626 = vsel %vm610, %v528, 0.0
        %v627 = vsel %vm611, %v529, 0.0
        %v628 = vsel %vm612, %v530, 0.0
        %v629 = vsel %vm613, %v531, 0.0
        %v630 = vsel %vm614, %v532, 0.0
        %v631 = vsel %vm615, %v533, 0.0
        %v632 = vsel %vm616, %v534, 0.0
        %v633 = vsel %vm617, %v535, 0.0
        %v634 = vsel %vm618, %v536, 0.0
        %v635 = vsel %vm619, %v537, 0.0
        %v636 = vsel %vm620, %v538, 0.0
        %v637 = vsel %vm621, %v539, 0.0
        %v638 = vsel %vm622, %v540, 0.0
        %v639 = vsel %vm623, %v541, 0.0
        %v640 = vsel %vm576, 1, 0
        %v641 = vsel %vm577, 1, 0
        %v642 = vsel %vm578, 1, 0
        %v643 = vsel %vm579, 1, 0
        %v644 = vsel %vm580, 1, 0
        %v645 = vsel %vm581, 1, 0
        %v646 = vsel %vm582, 1, 0
        %v647 = vsel %vm583, 1, 0
        %v648 = vsel %vm584, 1, 0
        %v649 = vsel %vm585, 1, 0
        %v650 = vsel %vm586, 1, 0
        %v651 = vsel %vm587, 1, 0
        %v652 = vsel %vm588, 1, 0
        %v653 = vsel %vm589, 1, 0
        %v654 = vsel %vm590, 1, 0
        %v655 = vsel %vm591, 1, 0
        %vm656 = vcmp.eq.s32.totalorder %v640, 1
        %vm657 = vcmp.eq.s32.totalorder %v641, 1
        %vm658 = vcmp.eq.s32.totalorder %v642, 1
        %vm659 = vcmp.eq.s32.totalorder %v643, 1
        %vm660 = vcmp.eq.s32.totalorder %v644, 1
        %vm661 = vcmp.eq.s32.totalorder %v645, 1
        %vm662 = vcmp.eq.s32.totalorder %v646, 1
        %vm663 = vcmp.eq.s32.totalorder %v647, 1
        %vm664 = vcmp.eq.s32.totalorder %v648, 1
        %vm665 = vcmp.eq.s32.totalorder %v649, 1
        %vm666 = vcmp.eq.s32.totalorder %v650, 1
        %vm667 = vcmp.eq.s32.totalorder %v651, 1
        %vm668 = vcmp.eq.s32.totalorder %v652, 1
        %vm669 = vcmp.eq.s32.totalorder %v653, 1
        %vm670 = vcmp.eq.s32.totalorder %v654, 1
        %vm671 = vcmp.eq.s32.totalorder %v655, 1
        %v672 = vsel %vm656, %v528, 0.0
        %v673 = vsel %vm657, %v529, 0.0
        %v674 = vsel %vm658, %v530, 0.0
        %v675 = vsel %vm659, %v531, 0.0
        %v676 = vsel %vm660, %v532, 0.0
        %v677 = vsel %vm661, %v533, 0.0
        %v678 = vsel %vm662, %v534, 0.0
        %v679 = vsel %vm663, %v535, 0.0
        %v680 = vsel %vm664, %v536, 0.0
        %v681 = vsel %vm665, %v537, 0.0
        %v682 = vsel %vm666, %v538, 0.0
        %v683 = vsel %vm667, %v539, 0.0
        %v684 = vsel %vm668, %v540, 0.0
        %v685 = vsel %vm669, %v541, 0.0
        %v686 = vsel %vm670, %v542, 0.0
        %v687 = vsel %vm671, %v527, 0.0
        %704 = vrot.lane.b32.xlu0 %v527, 4
        %v705 = vpop.permute.xlu0 %704
        %706 = vrot.lane.b32.xlu0 %v528, 4
        %v707 = vpop.permute.xlu0 %706
        %708 = vrot.lane.b32.xlu0 %v529, 4
        %v709 = vpop.permute.xlu0 %708
        %710 = vrot.lane.b32.xlu0 %v530, 4
        %v711 = vpop.permute.xlu0 %710
        %712 = vrot.lane.b32.xlu0 %v531, 4
        %v713 = vpop.permute.xlu0 %712
        %714 = vrot.lane.b32.xlu0 %v532, 4
        %v715 = vpop.permute.xlu0 %714
        %716 = vrot.lane.b32.xlu0 %v533, 4
        %v717 = vpop.permute.xlu0 %716
        %718 = vrot.lane.b32.xlu0 %v534, 4
        %v719 = vpop.permute.xlu0 %718
        %720 = vrot.lane.b32.xlu0 %v535, 4
        %v721 = vpop.permute.xlu0 %720
        %722 = vrot.lane.b32.xlu0 %v536, 4
        %v723 = vpop.permute.xlu0 %722
        %724 = vrot.lane.b32.xlu0 %v537, 4
        %v725 = vpop.permute.xlu0 %724
        %726 = vrot.lane.b32.xlu0 %v538, 4
        %v727 = vpop.permute.xlu0 %726
        %728 = vrot.lane.b32.xlu0 %v539, 4
        %v729 = vpop.permute.xlu0 %728
        %730 = vrot.lane.b32.xlu0 %v540, 4
        %v731 = vpop.permute.xlu0 %730
        %732 = vrot.lane.b32.xlu0 %v541, 4
        %v733 = vpop.permute.xlu0 %732
        %734 = vrot.lane.b32.xlu0 %v542, 4
        %v735 = vpop.permute.xlu0 %734
        %768 = vrot.lane.b32.xlu0 %v672, 8
        %v769 = vpop.permute.xlu0 %768
        %770 = vrot.lane.b32.xlu0 %v673, 8
        %v771 = vpop.permute.xlu0 %770
        %772 = vrot.lane.b32.xlu0 %v674, 8
        %v773 = vpop.permute.xlu0 %772
        %774 = vrot.lane.b32.xlu0 %v675, 8
        %v775 = vpop.permute.xlu0 %774
        %776 = vrot.lane.b32.xlu0 %v676, 8
        %v777 = vpop.permute.xlu0 %776
        %778 = vrot.lane.b32.xlu0 %v677, 8
        %v779 = vpop.permute.xlu0 %778
        %780 = vrot.lane.b32.xlu0 %v678, 8
        %v781 = vpop.permute.xlu0 %780
        %782 = vrot.lane.b32.xlu0 %v679, 8
        %v783 = vpop.permute.xlu0 %782
        %784 = vrot.lane.b32.xlu0 %v680, 8
        %v785 = vpop.permute.xlu0 %784
        %786 = vrot.lane.b32.xlu0 %v681, 8
        %v787 = vpop.permute.xlu0 %786
        %788 = vrot.lane.b32.xlu0 %v682, 8
        %v789 = vpop.permute.xlu0 %788
        %790 = vrot.lane.b32.xlu0 %v683, 8
        %v791 = vpop.permute.xlu0 %790
        %792 = vrot.lane.b32.xlu0 %v684, 8
        %v793 = vpop.permute.xlu0 %792
        %794 = vrot.lane.b32.xlu0 %v685, 8
        %v795 = vpop.permute.xlu0 %794
        %796 = vrot.lane.b32.xlu0 %v686, 8
        %v797 = vpop.permute.xlu0 %796
        %798 = vrot.lane.b32.xlu0 %v687, 8
        %v799 = vpop.permute.xlu0 %798
        %vm816 = vcmask 31744
        %v817 = vsel %vm816, %v624, %v705
        %v818 = vsel %vm816, %v625, %v707
        %v819 = vsel %vm816, %v626, %v709
        %v820 = vsel %vm816, %v627, %v711
        %v821 = vsel %vm816, %v628, %v713
        %v822 = vsel %vm816, %v629, %v715
        %v823 = vsel %vm816, %v630, %v717
        %v824 = vsel %vm816, %v631, %v719
        %v825 = vsel %vm816, %v632, %v721
        %v826 = vsel %vm816, %v633, %v723
        %v827 = vsel %vm816, %v634, %v725
        %v828 = vsel %vm816, %v635, %v727
        %v829 = vsel %vm816, %v636, %v729
        %v830 = vsel %vm816, %v637, %v731
        %v831 = vsel %vm816, %v638, %v733
        %v832 = vsel %vm816, %v639, %v735
        %vm833 = vcmask 64512
        %v834 = vsel %vm833, %v817, %v769
        %v835 = vsel %vm833, %v818, %v771
        %v836 = vsel %vm833, %v819, %v773
        %v837 = vsel %vm833, %v820, %v775
        %v838 = vsel %vm833, %v821, %v777
        %v839 = vsel %vm833, %v822, %v779
        %v840 = vsel %vm833, %v823, %v781
        %v841 = vsel %vm833, %v824, %v783
        %v842 = vsel %vm833, %v825, %v785
        %v843 = vsel %vm833, %v826, %v787
        %v844 = vsel %vm833, %v827, %v789
        %v845 = vsel %vm833, %v828, %v791
        %v846 = vsel %vm833, %v829, %v793
        %v847 = vsel %vm833, %v830, %v795
        %v848 = vsel %vm833, %v831, %v797
        %v849 = vsel %vm833, %v832, %v799
        %v850 = vpack.c.bf16 %v835, %v834
        %v851 = vpack.c.bf16 %v837, %v836
        %v852 = vpack.c.bf16 %v839, %v838
        %v853 = vpack.c.bf16 %v841, %v840
        %v854 = vpack.c.bf16 %v843, %v842
        %v855 = vpack.c.bf16 %v845, %v844
        %v856 = vpack.c.bf16 %v847, %v846
        %v857 = vpack.c.bf16 %v849, %v848
        %v858 = vld [vmem:[%s2] sm:$0xf]
        %v859 = vld [vmem:[%s2 + $0x4] sm:$0x3]
        %v860 = vld [vmem:[%s3] sm:$0x1]
        %v862 = vlaneseq
        %v863 = vshrl.u32 %v862, 7
        %v864 = vsub.s32 0, %v863
        %v865 = vrot.slane %v860, %v864
        %v869 = vunpack.c.l.b16 %v858
        %v870 = vunpack.c.l.b16 %v859
        %v871 = vpack.c.b16 %v870, %v869
        %vm872 = vcmask 97280
        %v874 = vsel %vm872, %v850, 0
        %v877 = vsel %vm872, %v851, 0
        %v880 = vsel %vm872, %v852, 0
        %v883 = vsel %vm872, %v853, 0
        %v886 = vsel %vm872, %v854, 0
        %v889 = vsel %vm872, %v855, 0
        %v892 = vsel %vm872, %v856, 0
        %v895 = vsel %vm872, %v857, 0
        %vm897 = vcmask 1045504
        %v899 = vsel %vm897, %v871, 0
        %901 = vmatprep.subr.bf16.mxu0 0
        %902 = vmatpush1.bf16.msra.mxu0 0
        %903 = vmatprep.subr.bf16.mxu0 0
        %904 = vmatpush1.bf16.msra.mxu0 0
        %905 = vmatprep.subr.bf16.mxu0 0
        %906 = vmatpush1.bf16.msra.mxu0 0
        %907 = vmatprep.subr.bf16.mxu0 0
        %908 = vmatpush1.bf16.msra.mxu0 0
        %909 = vmatprep.subr.bf16.mxu0 0
        %910 = vmatpush1.bf16.msra.mxu0 0
        %911 = vmatprep.subr.bf16.mxu0 0
        %912 = vmatpush1.bf16.msra.mxu0 0
        %913 = vmatprep.subr.bf16.mxu0 0
        %914 = vmatpush1.bf16.msra.mxu0 0
        %915 = vmatprep.subr.bf16.mxu0 0
        %916 = vmatpush1.bf16.msra.mxu0 %v899
        %917 = vmatprep.subr.bf16.mxu0 0
        %918 = vmatpush2.bf16.msra.mxu0 0
        %919 = vmatprep.subr.bf16.mxu0 0
        %920 = vmatpush2.bf16.msra.mxu0 0
        %921 = vmatprep.subr.bf16.mxu0 0
        %922 = vmatpush2.bf16.msra.mxu0 0
        %923 = vmatprep.subr.bf16.mxu0 0
        %924 = vmatpush2.bf16.msra.mxu0 0
        %925 = vmatprep.subr.bf16.mxu0 0
        %926 = vmatpush2.bf16.msra.mxu0 0
        %927 = vmatprep.subr.bf16.mxu0 0
        %928 = vmatpush2.bf16.msra.mxu0 0
        %929 = vmatprep.subr.bf16.mxu0 0
        %930 = vmatpush2.bf16.msra.mxu0 0
        %931 = vmatprep.subr.bf16.mxu0 0
        %932 = vmatpush2.bf16.msra.mxu0 0
        %933 = vmatprep.mubr.bf16.mxu0 0
        %934 = vmatmul.mubr.bf16.gmra.mxu0 %v874
        %v935 = vpop.f32.mrf.mxu0
        %v936 = vadd.f32 %v865, %v935
        %v937 = vpop.f32.mrf.mxu0
        %v938 = vpop.f32.mrf.mxu0
        %v939 = vadd.f32 %v865, %v938
        %v940 = vpop.f32.mrf.mxu0
        %941 = vmatprep.mubr.bf16.mxu0 0
        %942 = vmatmul.mubr.bf16.gmra.mxu0 %v877
        %v943 = vpop.f32.mrf.mxu0
        %v944 = vadd.f32 %v865, %v943
        %v945 = vpop.f32.mrf.mxu0
        %v946 = vpop.f32.mrf.mxu0
        %v947 = vadd.f32 %v865, %v946
        %v948 = vpop.f32.mrf.mxu0
        %949 = vmatprep.mubr.bf16.mxu0 0
        %950 = vmatmul.mubr.bf16.gmra.mxu0 %v880
        %v951 = vpop.f32.mrf.mxu0
        %v952 = vadd.f32 %v865, %v951
        %v953 = vpop.f32.mrf.mxu0
        %v954 = vpop.f32.mrf.mxu0
        %v955 = vadd.f32 %v865, %v954
        %v956 = vpop.f32.mrf.mxu0
        %957 = vmatprep.mubr.bf16.mxu0 0
        %958 = vmatmul.mubr.bf16.gmra.mxu0 %v883
        %v959 = vpop.f32.mrf.mxu0
        %v960 = vadd.f32 %v865, %v959
        %v961 = vpop.f32.mrf.mxu0
        %v962 = vpop.f32.mrf.mxu0
        %v963 = vadd.f32 %v865, %v962
        %v964 = vpop.f32.mrf.mxu0
        %965 = vmatprep.mubr.bf16.mxu0 0
        %966 = vmatmul.mubr.bf16.gmra.mxu0 %v886
        %v967 = vpop.f32.mrf.mxu0
        %v968 = vadd.f32 %v865, %v967
        %v969 = vpop.f32.mrf.mxu0
        %v970 = vpop.f32.mrf.mxu0
        %v971 = vadd.f32 %v865, %v970
        %v972 = vpop.f32.mrf.mxu0
        %973 = vmatprep.mubr.bf16.mxu0 0
        %974 = vmatmul.mubr.bf16.gmra.mxu0 %v889
        %v975 = vpop.f32.mrf.mxu0
        %v976 = vadd.f32 %v865, %v975
        %v977 = vpop.f32.mrf.mxu0
        %v978 = vpop.f32.mrf.mxu0
        %v979 = vadd.f32 %v865, %v978
        %v980 = vpop.f32.mrf.mxu0
        %981 = vmatprep.mubr.bf16.mxu0 0
        %982 = vmatmul.mubr.bf16.gmra.mxu0 %v892
        %v983 = vpop.f32.mrf.mxu0
        %v984 = vadd.f32 %v865, %v983
        %v985 = vpop.f32.mrf.mxu0
        %v986 = vpop.f32.mrf.mxu0
        %v987 = vadd.f32 %v865, %v986
        %v988 = vpop.f32.mrf.mxu0
        %989 = vmatprep.mubr.bf16.mxu0 0
        %990 = vmatmul.mubr.bf16.gmra.mxu0 %v895
        %v991 = vpop.f32.mrf.mxu0
        %v992 = vadd.f32 %v865, %v991
        %v993 = vpop.f32.mrf.mxu0
        %v994 = vpop.f32.mrf.mxu0
        %v995 = vadd.f32 %v865, %v994
        %v996 = vpop.f32.mrf.mxu0
        %997 = vdwg.mxu0
        %v998 = vmax.f32 %v936, 0.0
        %v999 = vmax.f32 %v939, 0.0
        %v1000 = vmax.f32 %v944, 0.0
        %v1001 = vmax.f32 %v947, 0.0
        %v1002 = vmax.f32 %v952, 0.0
        %v1003 = vmax.f32 %v955, 0.0
        %v1004 = vmax.f32 %v960, 0.0
        %v1005 = vmax.f32 %v963, 0.0
        %v1006 = vmax.f32 %v968, 0.0
        %v1007 = vmax.f32 %v971, 0.0
        %v1008 = vmax.f32 %v976, 0.0
        %v1009 = vmax.f32 %v979, 0.0
        %v1010 = vmax.f32 %v984, 0.0
        %v1011 = vmax.f32 %v987, 0.0
        %v1012 = vmax.f32 %v992, 0.0
        %v1013 = vmax.f32 %v995, 0.0
        %v1014 = vsel %vm608, %v1013, 0.0
        %v1015 = vsel %vm609, %v998, 0.0
        %v1016 = vsel %vm610, %v999, 0.0
        %v1017 = vsel %vm611, %v1000, 0.0
        %v1018 = vsel %vm612, %v1001, 0.0
        %v1019 = vsel %vm613, %v1002, 0.0
        %v1020 = vsel %vm614, %v1003, 0.0
        %v1021 = vsel %vm615, %v1004, 0.0
        %v1022 = vsel %vm616, %v1005, 0.0
        %v1023 = vsel %vm617, %v1006, 0.0
        %v1024 = vsel %vm618, %v1007, 0.0
        %v1025 = vsel %vm619, %v1008, 0.0
        %v1026 = vsel %vm620, %v1009, 0.0
        %v1027 = vsel %vm621, %v1010, 0.0
        %v1028 = vsel %vm622, %v1011, 0.0
        %v1029 = vsel %vm623, %v1012, 0.0
        %v1030 = vsel %vm656, %v999, 0.0
        %v1031 = vsel %vm657, %v1000, 0.0
        %v1032 = vsel %vm658, %v1001, 0.0
        %v1033 = vsel %vm659, %v1002, 0.0
        %v1034 = vsel %vm660, %v1003, 0.0
        %v1035 = vsel %vm661, %v1004, 0.0
        %v1036 = vsel %vm662, %v1005, 0.0
        %v1037 = vsel %vm663, %v1006, 0.0
        %v1038 = vsel %vm664, %v1007, 0.0
        %v1039 = vsel %vm665, %v1008, 0.0
        %v1040 = vsel %vm666, %v1009, 0.0
        %v1041 = vsel %vm667, %v1010, 0.0
        %v1042 = vsel %vm668, %v1011, 0.0
        %v1043 = vsel %vm669, %v1012, 0.0
        %v1044 = vsel %vm670, %v1013, 0.0
        %v1045 = vsel %vm671, %v998, 0.0
        %1062 = vrot.lane.b32.xlu0 %v998, 64
        %v1063 = vpop.permute.xlu0 %1062
        %1064 = vrot.lane.b32.xlu0 %v999, 64
        %v1065 = vpop.permute.xlu0 %1064
        %1066 = vrot.lane.b32.xlu0 %v1000, 64
        %v1067 = vpop.permute.xlu0 %1066
        %1068 = vrot.lane.b32.xlu0 %v1001, 64
        %v1069 = vpop.permute.xlu0 %1068
        %1070 = vrot.lane.b32.xlu0 %v1002, 64
        %v1071 = vpop.permute.xlu0 %1070
        %1072 = vrot.lane.b32.xlu0 %v1003, 64
        %v1073 = vpop.permute.xlu0 %1072
        %1074 = vrot.lane.b32.xlu0 %v1004, 64
        %v1075 = vpop.permute.xlu0 %1074
        %1076 = vrot.lane.b32.xlu0 %v1005, 64
        %v1077 = vpop.permute.xlu0 %1076
        %1078 = vrot.lane.b32.xlu0 %v1006, 64
        %v1079 = vpop.permute.xlu0 %1078
        %1080 = vrot.lane.b32.xlu0 %v1007, 64
        %v1081 = vpop.permute.xlu0 %1080
        %1082 = vrot.lane.b32.xlu0 %v1008, 64
        %v1083 = vpop.permute.xlu0 %1082
        %1084 = vrot.lane.b32.xlu0 %v1009, 64
        %v1085 = vpop.permute.xlu0 %1084
        %1086 = vrot.lane.b32.xlu0 %v1010, 64
        %v1087 = vpop.permute.xlu0 %1086
        %1088 = vrot.lane.b32.xlu0 %v1011, 64
        %v1089 = vpop.permute.xlu0 %1088
        %1090 = vrot.lane.b32.xlu0 %v1012, 64
        %v1091 = vpop.permute.xlu0 %1090
        %1092 = vrot.lane.b32.xlu0 %v1013, 64
        %v1093 = vpop.permute.xlu0 %1092
        %vm1110 = vcmask 523264
        %v1111 = vsel %vm1110, %v1014, %v1063
        %v1112 = vsel %vm1110, %v1015, %v1065
        %v1113 = vsel %vm1110, %v1016, %v1067
        %v1114 = vsel %vm1110, %v1017, %v1069
        %v1115 = vsel %vm1110, %v1018, %v1071
        %v1116 = vsel %vm1110, %v1019, %v1073
        %v1117 = vsel %vm1110, %v1020, %v1075
        %v1118 = vsel %vm1110, %v1021, %v1077
        %v1119 = vsel %vm1110, %v1022, %v1079
        %v1120 = vsel %vm1110, %v1023, %v1081
        %v1121 = vsel %vm1110, %v1024, %v1083
        %v1122 = vsel %vm1110, %v1025, %v1085
        %v1123 = vsel %vm1110, %v1026, %v1087
        %v1124 = vsel %vm1110, %v1027, %v1089
        %v1125 = vsel %vm1110, %v1028, %v1091
        %v1126 = vsel %vm1110, %v1029, %v1093
        %v1127 = vpack.c.bf16 %v1112, %v1111
        %v1128 = vpack.c.bf16 %v1031, %v1030
        %v1129 = vpack.c.bf16 %v1114, %v1113
        %v1130 = vpack.c.bf16 %v1033, %v1032
        %v1131 = vpack.c.bf16 %v1116, %v1115
        %v1132 = vpack.c.bf16 %v1035, %v1034
        %v1133 = vpack.c.bf16 %v1118, %v1117
        %v1134 = vpack.c.bf16 %v1037, %v1036
        %v1135 = vpack.c.bf16 %v1120, %v1119
        %v1136 = vpack.c.bf16 %v1039, %v1038
        %v1137 = vpack.c.bf16 %v1122, %v1121
        %v1138 = vpack.c.bf16 %v1041, %v1040
        %v1139 = vpack.c.bf16 %v1124, %v1123
        %v1140 = vpack.c.bf16 %v1043, %v1042
        %v1141 = vpack.c.bf16 %v1126, %v1125
        %v1142 = vpack.c.bf16 %v1045, %v1044
        %v1143 = vld [vmem:[%s4] sm:$0xf]
        %v1144 = vld [vmem:[%s4 + $0x4] sm:$0xf]
        %v1145 = vld [vmem:[%s4 + $0x8] sm:$0xf]
        %v1146 = vld [vmem:[%s4 + $0xc] sm:$0xf]
        %v1147 = vld [vmem:[%s4 + $0x10] sm:$0xf]
        %v1148 = vld [vmem:[%s4 + $0x14] sm:$0xf]
        %v1149 = vld [vmem:[%s4 + $0x18] sm:$0xf]
        %v1150 = vld [vmem:[%s4 + $0x1c] sm:$0xf]
        %v1151 = vld [vmem:[%s4 + $0x20] sm:$0xf]
        %v1152 = vld [vmem:[%s4 + $0x24] sm:$0xf]
        %v1153 = vld [vmem:[%s4 + $0x28] sm:$0xf]
        %v1154 = vld [vmem:[%s4 + $0x2c] sm:$0xf]
        %v1155 = vld [vmem:[%s4 + $0x30] sm:$0xf]
        %v1156 = vld [vmem:[%s4 + $0x34] sm:$0xf]
        %v1157 = vld [vmem:[%s4 + $0x38] sm:$0xf]
        %v1158 = vld [vmem:[%s4 + $0x3c] sm:$0xf]
        %v1159 = vld [vmem:[%s4 + $0x40] sm:$0xf]
        %v1160 = vld [vmem:[%s4 + $0x44] sm:$0xf]
        %v1161 = vld [vmem:[%s4 + $0x48] sm:$0xf]
        %v1162 = vld [vmem:[%s4 + $0x4c] sm:$0xf]
        %v1163 = vld [vmem:[%s4 + $0x50] sm:$0xf]
        %v1164 = vld [vmem:[%s4 + $0x54] sm:$0xf]
        %v1165 = vld [vmem:[%s4 + $0x58] sm:$0xf]
        %v1166 = vld [vmem:[%s4 + $0x5c] sm:$0xf]
        %v1167 = vld [vmem:[%s5] sm:$0x1]
        %v1169 = vlaneseq
        %v1170 = vshrl.u32 %v1169, 7
        %v1171 = vsub.s32 0, %v1170
        %v1172 = vrot.slane %v1167, %v1171
        %v1198 = vunpack.c.l.b16 %v1143
        %v1199 = vunpack.c.l.b16 %v1144
        %v1200 = vunpack.c.l.b16 %v1145
        %v1201 = vunpack.c.l.b16 %v1146
        %v1202 = vunpack.c.l.b16 %v1147
        %v1203 = vunpack.c.l.b16 %v1148
        %v1204 = vunpack.c.l.b16 %v1149
        %v1205 = vunpack.c.l.b16 %v1150
        %v1206 = vunpack.c.l.b16 %v1151
        %v1207 = vunpack.c.l.b16 %v1152
        %v1208 = vunpack.c.l.b16 %v1153
        %v1209 = vunpack.c.l.b16 %v1154
        %v1210 = vunpack.c.l.b16 %v1155
        %v1211 = vunpack.c.l.b16 %v1156
        %v1212 = vunpack.c.l.b16 %v1157
        %v1213 = vunpack.c.l.b16 %v1158
        %v1214 = vunpack.c.l.b16 %v1159
        %v1215 = vunpack.c.l.b16 %v1160
        %v1216 = vunpack.c.l.b16 %v1161
        %v1217 = vunpack.c.l.b16 %v1162
        %v1218 = vunpack.c.l.b16 %v1163
        %v1219 = vunpack.c.l.b16 %v1164
        %v1220 = vunpack.c.l.b16 %v1165
        %v1221 = vunpack.c.l.b16 %v1166
        %v1222 = vpack.c.b16 %v1199, %v1198
        %v1223 = vpack.c.b16 %v1201, %v1200
        %v1224 = vpack.c.b16 %v1203, %v1202
        %v1225 = vpack.c.b16 %v1205, %v1204
        %v1226 = vpack.c.b16 %v1207, %v1206
        %v1227 = vpack.c.b16 %v1209, %v1208
        %v1228 = vpack.c.b16 %v1211, %v1210
        %v1229 = vpack.c.b16 %v1213, %v1212
        %v1230 = vpack.c.b16 %v1215, %v1214
        %v1231 = vpack.c.b16 %v1217, %v1216
        %v1232 = vpack.c.b16 %v1219, %v1218
        %v1233 = vpack.c.b16 %v1221, %v1220
        %v1247 = vsel %vm1110, %v1128, 0
        %v1250 = vsel %vm1110, %v1130, 0
        %v1253 = vsel %vm1110, %v1132, 0
        %v1256 = vsel %vm1110, %v1134, 0
        %v1259 = vsel %vm1110, %v1136, 0
        %v1262 = vsel %vm1110, %v1138, 0
        %v1265 = vsel %vm1110, %v1140, 0
        %v1268 = vsel %vm1110, %v1142, 0
        %1270 = vmatprep.subr.bf16.mxu0 0
        %1271 = vmatpush1.bf16.msra.mxu0 %v1229
        %1272 = vmatprep.subr.bf16.mxu0 0
        %1273 = vmatpush1.bf16.msra.mxu0 %v1228
        %1274 = vmatprep.subr.bf16.mxu0 0
        %1275 = vmatpush1.bf16.msra.mxu0 %v1227
        %1276 = vmatprep.subr.bf16.mxu0 0
        %1277 = vmatpush1.bf16.msra.mxu0 %v1226
        %1278 = vmatprep.subr.bf16.mxu0 0
        %1279 = vmatpush1.bf16.msra.mxu0 %v1225
        %1280 = vmatprep.subr.bf16.mxu0 0
        %1281 = vmatpush1.bf16.msra.mxu0 %v1224
        %1282 = vmatprep.subr.bf16.mxu0 0
        %1283 = vmatpush1.bf16.msra.mxu0 %v1223
        %1284 = vmatprep.subr.bf16.mxu0 0
        %1285 = vmatpush1.bf16.msra.mxu0 %v1222
        %1286 = vmatprep.subr.bf16.mxu0 0
        %1287 = vmatpush2.bf16.msra.mxu0 0
        %1288 = vmatprep.subr.bf16.mxu0 0
        %1289 = vmatpush2.bf16.msra.mxu0 0
        %1290 = vmatprep.subr.bf16.mxu0 0
        %1291 = vmatpush2.bf16.msra.mxu0 0
        %1292 = vmatprep.subr.bf16.mxu0 0
        %1293 = vmatpush2.bf16.msra.mxu0 0
        %1294 = vmatprep.subr.bf16.mxu0 0
        %1295 = vmatpush2.bf16.msra.mxu0 %v1233
        %1296 = vmatprep.subr.bf16.mxu0 0
        %1297 = vmatpush2.bf16.msra.mxu0 %v1232
        %1298 = vmatprep.subr.bf16.mxu0 0
        %1299 = vmatpush2.bf16.msra.mxu0 %v1231
        %1300 = vmatprep.subr.bf16.mxu0 0
        %1301 = vmatpush2.bf16.msra.mxu0 %v1230
        %1302 = vmatprep.mubr.bf16.mxu0 %v1247
        %1303 = vmatmul.mubr.bf16.gmra.mxu0 %v1127
        %v1304 = vpop.f32.mrf.mxu0
        %v1305 = vadd.f32 %v1172, %v1304
        %v1306 = vpop.f32.mrf.mxu0
        %v1307 = vpop.f32.mrf.mxu0
        %v1308 = vadd.f32 %v1172, %v1307
        %v1309 = vpop.f32.mrf.mxu0
        %1310 = vmatprep.mubr.bf16.mxu0 %v1250
        %1311 = vmatmul.mubr.bf16.gmra.mxu0 %v1129
        %v1312 = vpop.f32.mrf.mxu0
        %v1313 = vadd.f32 %v1172, %v1312
        %v1314 = vpop.f32.mrf.mxu0
        %v1315 = vpop.f32.mrf.mxu0
        %v1316 = vadd.f32 %v1172, %v1315
        %v1317 = vpop.f32.mrf.mxu0
        %1318 = vmatprep.mubr.bf16.mxu0 %v1253
        %1319 = vmatmul.mubr.bf16.gmra.mxu0 %v1131
        %v1320 = vpop.f32.mrf.mxu0
        %v1321 = vadd.f32 %v1172, %v1320
        %v1322 = vpop.f32.mrf.mxu0
        %v1323 = vpop.f32.mrf.mxu0
        %v1324 = vadd.f32 %v1172, %v1323
        %v1325 = vpop.f32.mrf.mxu0
        %1326 = vmatprep.mubr.bf16.mxu0 %v1256
        %1327 = vmatmul.mubr.bf16.gmra.mxu0 %v1133
        %v1328 = vpop.f32.mrf.mxu0
        %v1329 = vadd.f32 %v1172, %v1328
        %v1330 = vpop.f32.mrf.mxu0
        %v1331 = vpop.f32.mrf.mxu0
        %v1332 = vadd.f32 %v1172, %v1331
        %v1333 = vpop.f32.mrf.mxu0
        %1334 = vmatprep.mubr.bf16.mxu0 %v1259
        %1335 = vmatmul.mubr.bf16.gmra.mxu0 %v1135
        %v1336 = vpop.f32.mrf.mxu0
        %v1337 = vadd.f32 %v1172, %v1336
        %v1338 = vpop.f32.mrf.mxu0
        %v1339 = vpop.f32.mrf.mxu0
        %v1340 = vadd.f32 %v1172, %v1339
        %v1341 = vpop.f32.mrf.mxu0
        %1342 = vmatprep.mubr.bf16.mxu0 %v1262
        %1343 = vmatmul.mubr.bf16.gmra.mxu0 %v1137
        %v1344 = vpop.f32.mrf.mxu0
        %v1345 = vadd.f32 %v1172, %v1344
        %v1346 = vpop.f32.mrf.mxu0
        %v1347 = vpop.f32.mrf.mxu0
        %v1348 = vadd.f32 %v1172, %v1347
        %v1349 = vpop.f32.mrf.mxu0
        %1350 = vmatprep.mubr.bf16.mxu0 %v1265
        %1351 = vmatmul.mubr.bf16.gmra.mxu0 %v1139
        %v1352 = vpop.f32.mrf.mxu0
        %v1353 = vadd.f32 %v1172, %v1352
        %v1354 = vpop.f32.mrf.mxu0
        %v1355 = vpop.f32.mrf.mxu0
        %v1356 = vadd.f32 %v1172, %v1355
        %v1357 = vpop.f32.mrf.mxu0
        %1358 = vmatprep.mubr.bf16.mxu0 %v1268
        %1359 = vmatmul.mubr.bf16.gmra.mxu0 %v1141
        %v1360 = vpop.f32.mrf.mxu0
        %v1361 = vadd.f32 %v1172, %v1360
        %v1362 = vpop.f32.mrf.mxu0
        %v1363 = vpop.f32.mrf.mxu0
        %v1364 = vadd.f32 %v1172, %v1363
        %v1365 = vpop.f32.mrf.mxu0
        %1366 = vdwg.mxu0
        %1368 = vrot.lane.b32.xlu0 %v1308, 32
        %v1369 = vpop.permute.xlu0 %1368
        %1372 = vrot.lane.b32.xlu0 %v1313, 64
        %v1373 = vpop.permute.xlu0 %1372
        %1376 = vrot.lane.b32.xlu0 %v1316, 96
        %v1377 = vpop.permute.xlu0 %1376
        %1380 = vrot.lane.b32.xlu0 %v1324, 32
        %v1381 = vpop.permute.xlu0 %1380
        %1384 = vrot.lane.b32.xlu0 %v1329, 64
        %v1385 = vpop.permute.xlu0 %1384
        %1388 = vrot.lane.b32.xlu0 %v1332, 96
        %v1389 = vpop.permute.xlu0 %1388
        %1392 = vrot.lane.b32.xlu0 %v1340, 32
        %v1393 = vpop.permute.xlu0 %1392
        %1396 = vrot.lane.b32.xlu0 %v1345, 64
        %v1397 = vpop.permute.xlu0 %1396
        %1400 = vrot.lane.b32.xlu0 %v1348, 96
        %v1401 = vpop.permute.xlu0 %1400
        %1404 = vrot.lane.b32.xlu0 %v1356, 32
        %v1405 = vpop.permute.xlu0 %1404
        %1408 = vrot.lane.b32.xlu0 %v1361, 64
        %v1409 = vpop.permute.xlu0 %1408
        %1412 = vrot.lane.b32.xlu0 %v1364, 96
        %v1413 = vpop.permute.xlu0 %1412
        %vm1415 = vcmask 261120
        %v1416 = vsel %vm1415, %v1305, %v1369
        %v1417 = vsel %vm1110, %v1416, %v1373
        %vm1418 = vcmask 785408
        %v1419 = vsel %vm1418, %v1417, %v1377
        %v1420 = vsel %vm1415, %v1321, %v1381
        %v1421 = vsel %vm1110, %v1420, %v1385
        %v1422 = vsel %vm1418, %v1421, %v1389
        %v1423 = vsel %vm1415, %v1337, %v1393
        %v1424 = vsel %vm1110, %v1423, %v1397
        %v1425 = vsel %vm1418, %v1424, %v1401
        %v1426 = vsel %vm1415, %v1353, %v1405
        %v1427 = vsel %vm1110, %v1426, %v1409
        %v1428 = vsel %vm1418, %v1427, %v1413
        %v1429 = vpack.c.bf16 %v1419, %v1419
        %v1430 = vpack.c.bf16 %v1422, %v1422
        %v1431 = vpack.c.bf16 %v1425, %v1425
        %v1432 = vpack.c.bf16 %v1428, %v1428
        %v1433 = vld [vmem:[%s6] sm:$0xf]
        %v1434 = vld [vmem:[%s6 + $0x4] sm:$0xf]
        %v1435 = vld [vmem:[%s6 + $0x8] sm:$0xf]
        %v1436 = vld [vmem:[%s6 + $0xc] sm:$0xf]
        %v1437 = vld [vmem:[%s6 + $0x10] sm:$0xf]
        %v1438 = vld [vmem:[%s6 + $0x14] sm:$0xf]
        %v1439 = vld [vmem:[%s6 + $0x18] sm:$0xf]
        %v1440 = vld [vmem:[%s6 + $0x1c] sm:$0xf]
        %v1441 = vld [vmem:[%s6 + $0x20] sm:$0xf]
        %v1442 = vld [vmem:[%s6 + $0x24] sm:$0xf]
        %v1443 = vld [vmem:[%s6 + $0x28] sm:$0xf]
        %v1444 = vld [vmem:[%s6 + $0x2c] sm:$0xf]
        %v1445 = vld [vmem:[%s6 + $0x30] sm:$0xf]
        %v1446 = vld [vmem:[%s6 + $0x34] sm:$0xf]
        %v1447 = vld [vmem:[%s6 + $0x38] sm:$0xf]
        %v1448 = vld [vmem:[%s6 + $0x3c] sm:$0xf]
        %v1449 = vld [vmem:[%s6 + $0x40] sm:$0xf]
        %v1450 = vld [vmem:[%s6 + $0x44] sm:$0xf]
        %v1451 = vld [vmem:[%s6 + $0x48] sm:$0xf]
        %v1452 = vld [vmem:[%s6 + $0x4c] sm:$0xf]
        %v1453 = vld [vmem:[%s6 + $0x50] sm:$0xf]
        %v1454 = vld [vmem:[%s6 + $0x54] sm:$0xf]
        %v1455 = vld [vmem:[%s6 + $0x58] sm:$0xf]
        %v1456 = vld [vmem:[%s6 + $0x5c] sm:$0xf]
        %v1457 = vld [vmem:[%s6 + $0x60] sm:$0xf]
        %v1458 = vld [vmem:[%s6 + $0x64] sm:$0xf]
        %v1459 = vld [vmem:[%s6 + $0x68] sm:$0xf]
        %v1460 = vld [vmem:[%s6 + $0x6c] sm:$0xf]
        %v1461 = vld [vmem:[%s6 + $0x70] sm:$0xf]
        %v1462 = vld [vmem:[%s6 + $0x74] sm:$0xf]
        %v1463 = vld [vmem:[%s6 + $0x78] sm:$0xf]
        %v1464 = vld [vmem:[%s6 + $0x7c] sm:$0xf]
        %v1465 = vld [vmem:[%s6 + $0x80] sm:$0xf]
        %v1466 = vld [vmem:[%s6 + $0x84] sm:$0xf]
        %v1467 = vld [vmem:[%s6 + $0x88] sm:$0xf]
        %v1468 = vld [vmem:[%s6 + $0x8c] sm:$0xf]
        %v1469 = vld [vmem:[%s6 + $0x90] sm:$0xf]
        %v1470 = vld [vmem:[%s6 + $0x94] sm:$0xf]
        %v1471 = vld [vmem:[%s6 + $0x98] sm:$0xf]
        %v1472 = vld [vmem:[%s6 + $0x9c] sm:$0xf]
        %v1473 = vld [vmem:[%s6 + $0xa0] sm:$0xf]
        %v1474 = vld [vmem:[%s6 + $0xa4] sm:$0xf]
        %v1475 = vld [vmem:[%s6 + $0xa8] sm:$0xf]
        %v1476 = vld [vmem:[%s6 + $0xac] sm:$0xf]
        %v1477 = vld [vmem:[%s6 + $0xb0] sm:$0xf]
        %v1478 = vld [vmem:[%s6 + $0xb4] sm:$0xf]
        %v1479 = vld [vmem:[%s6 + $0xb8] sm:$0xf]
        %v1480 = vld [vmem:[%s6 + $0xbc] sm:$0xf]
        %v1481 = vld [vmem:[%s6 + $0xc0] sm:$0xf]
        %v1482 = vld [vmem:[%s6 + $0xc4] sm:$0xf]
        %v1483 = vld [vmem:[%s6 + $0xc8] sm:$0xf]
        %v1484 = vld [vmem:[%s6 + $0xcc] sm:$0xf]
        %v1485 = vld [vmem:[%s6 + $0xd0] sm:$0xf]
        %v1486 = vld [vmem:[%s6 + $0xd4] sm:$0xf]
        %v1487 = vld [vmem:[%s6 + $0xd8] sm:$0xf]
        %v1488 = vld [vmem:[%s6 + $0xdc] sm:$0xf]
        %v1489 = vld [vmem:[%s6 + $0xe0] sm:$0xf]
        %v1490 = vld [vmem:[%s6 + $0xe4] sm:$0xf]
        %v1491 = vld [vmem:[%s6 + $0xe8] sm:$0xf]
        %v1492 = vld [vmem:[%s6 + $0xec] sm:$0xf]
        %v1493 = vld [vmem:[%s6 + $0xf0] sm:$0xf]
        %v1494 = vld [vmem:[%s6 + $0xf4] sm:$0xf]
        %v1495 = vld [vmem:[%s6 + $0xf8] sm:$0xf]
        %v1496 = vld [vmem:[%s6 + $0xfc] sm:$0xf]
        %v1497 = vld [vmem:[%s7] sm:$0x1]
        %v1499 = vlaneseq
        %v1500 = vshrl.u32 %v1499, 7
        %v1501 = vsub.s32 0, %v1500
        %v1502 = vrot.slane %v1497, %v1501
        %v1568 = vunpack.c.l.b16 %v1433
        %v1569 = vunpack.c.l.b16 %v1434
        %v1570 = vunpack.c.l.b16 %v1435
        %v1571 = vunpack.c.l.b16 %v1436
        %v1572 = vunpack.c.l.b16 %v1437
        %v1573 = vunpack.c.l.b16 %v1438
        %v1574 = vunpack.c.l.b16 %v1439
        %v1575 = vunpack.c.l.b16 %v1440
        %v1576 = vunpack.c.l.b16 %v1441
        %v1577 = vunpack.c.l.b16 %v1442
        %v1578 = vunpack.c.l.b16 %v1443
        %v1579 = vunpack.c.l.b16 %v1444
        %v1580 = vunpack.c.l.b16 %v1445
        %v1581 = vunpack.c.l.b16 %v1446
        %v1582 = vunpack.c.l.b16 %v1447
        %v1583 = vunpack.c.l.b16 %v1448
        %v1584 = vunpack.c.l.b16 %v1449
        %v1585 = vunpack.c.l.b16 %v1450
        %v1586 = vunpack.c.l.b16 %v1451
        %v1587 = vunpack.c.l.b16 %v1452
        %v1588 = vunpack.c.l.b16 %v1453
        %v1589 = vunpack.c.l.b16 %v1454
        %v1590 = vunpack.c.l.b16 %v1455
        %v1591 = vunpack.c.l.b16 %v1456
        %v1592 = vunpack.c.l.b16 %v1457
        %v1593 = vunpack.c.l.b16 %v1458
        %v1594 = vunpack.c.l.b16 %v1459
        %v1595 = vunpack.c.l.b16 %v1460
        %v1596 = vunpack.c.l.b16 %v1461
        %v1597 = vunpack.c.l.b16 %v1462
        %v1598 = vunpack.c.l.b16 %v1463
        %v1599 = vunpack.c.l.b16 %v1464
        %v1600 = vunpack.c.l.b16 %v1465
        %v1601 = vunpack.c.l.b16 %v1466
        %v1602 = vunpack.c.l.b16 %v1467
        %v1603 = vunpack.c.l.b16 %v1468
        %v1604 = vunpack.c.l.b16 %v1469
        %v1605 = vunpack.c.l.b16 %v1470
        %v1606 = vunpack.c.l.b16 %v1471
        %v1607 = vunpack.c.l.b16 %v1472
        %v1608 = vunpack.c.l.b16 %v1473
        %v1609 = vunpack.c.l.b16 %v1474
        %v1610 = vunpack.c.l.b16 %v1475
        %v1611 = vunpack.c.l.b16 %v1476
        %v1612 = vunpack.c.l.b16 %v1477
        %v1613 = vunpack.c.l.b16 %v1478
        %v1614 = vunpack.c.l.b16 %v1479
        %v1615 = vunpack.c.l.b16 %v1480
        %v1616 = vunpack.c.l.b16 %v1481
        %v1617 = vunpack.c.l.b16 %v1482
        %v1618 = vunpack.c.l.b16 %v1483
        %v1619 = vunpack.c.l.b16 %v1484
        %v1620 = vunpack.c.l.b16 %v1485
        %v1621 = vunpack.c.l.b16 %v1486
        %v1622 = vunpack.c.l.b16 %v1487
        %v1623 = vunpack.c.l.b16 %v1488
        %v1624 = vunpack.c.l.b16 %v1489
        %v1625 = vunpack.c.l.b16 %v1490
        %v1626 = vunpack.c.l.b16 %v1491
        %v1627 = vunpack.c.l.b16 %v1492
        %v1628 = vunpack.c.l.b16 %v1493
        %v1629 = vunpack.c.l.b16 %v1494
        %v1630 = vunpack.c.l.b16 %v1495
        %v1631 = vunpack.c.l.b16 %v1496
        %v1632 = vpack.c.b16 %v1569, %v1568
        %v1633 = vpack.c.b16 %v1571, %v1570
        %v1634 = vpack.c.b16 %v1573, %v1572
        %v1635 = vpack.c.b16 %v1575, %v1574
        %v1636 = vpack.c.b16 %v1577, %v1576
        %v1637 = vpack.c.b16 %v1579, %v1578
        %v1638 = vpack.c.b16 %v1581, %v1580
        %v1639 = vpack.c.b16 %v1583, %v1582
        %v1640 = vpack.c.b16 %v1585, %v1584
        %v1641 = vpack.c.b16 %v1587, %v1586
        %v1642 = vpack.c.b16 %v1589, %v1588
        %v1643 = vpack.c.b16 %v1591, %v1590
        %v1644 = vpack.c.b16 %v1593, %v1592
        %v1645 = vpack.c.b16 %v1595, %v1594
        %v1646 = vpack.c.b16 %v1597, %v1596
        %v1647 = vpack.c.b16 %v1599, %v1598
        %v1648 = vpack.c.b16 %v1601, %v1600
        %v1649 = vpack.c.b16 %v1603, %v1602
        %v1650 = vpack.c.b16 %v1605, %v1604
        %v1651 = vpack.c.b16 %v1607, %v1606
        %v1652 = vpack.c.b16 %v1609, %v1608
        %v1653 = vpack.c.b16 %v1611, %v1610
        %v1654 = vpack.c.b16 %v1613, %v1612
        %v1655 = vpack.c.b16 %v1615, %v1614
        %v1656 = vpack.c.b16 %v1617, %v1616
        %v1657 = vpack.c.b16 %v1619, %v1618
        %v1658 = vpack.c.b16 %v1621, %v1620
        %v1659 = vpack.c.b16 %v1623, %v1622
        %v1660 = vpack.c.b16 %v1625, %v1624
        %v1661 = vpack.c.b16 %v1627, %v1626
        %v1662 = vpack.c.b16 %v1629, %v1628
        %v1663 = vpack.c.b16 %v1631, %v1630
        %1696 = vmatprep.subr.bf16.mxu0 0
        %1697 = vmatpush1.bf16.msra.mxu0 %v1639
        %1698 = vmatprep.subr.bf16.mxu0 0
        %1699 = vmatpush1.bf16.msra.mxu0 %v1638
        %1700 = vmatprep.subr.bf16.mxu0 0
        %1701 = vmatpush1.bf16.msra.mxu0 %v1637
        %1702 = vmatprep.subr.bf16.mxu0 0
        %1703 = vmatpush1.bf16.msra.mxu0 %v1636
        %1704 = vmatprep.subr.bf16.mxu0 0
        %1705 = vmatpush1.bf16.msra.mxu0 %v1635
        %1706 = vmatprep.subr.bf16.mxu0 0
        %1707 = vmatpush1.bf16.msra.mxu0 %v1634
        %1708 = vmatprep.subr.bf16.mxu0 0
        %1709 = vmatpush1.bf16.msra.mxu0 %v1633
        %1710 = vmatprep.subr.bf16.mxu0 0
        %1711 = vmatpush1.bf16.msra.mxu0 %v1632
        %1712 = vmatprep.subr.bf16.mxu0 0
        %1713 = vmatpush2.bf16.msra.mxu0 %v1647
        %1714 = vmatprep.subr.bf16.mxu0 0
        %1715 = vmatpush2.bf16.msra.mxu0 %v1646
        %1716 = vmatprep.subr.bf16.mxu0 0
        %1717 = vmatpush2.bf16.msra.mxu0 %v1645
        %1718 = vmatprep.subr.bf16.mxu0 0
        %1719 = vmatpush2.bf16.msra.mxu0 %v1644
        %1720 = vmatprep.subr.bf16.mxu0 0
        %1721 = vmatpush2.bf16.msra.mxu0 %v1643
        %1722 = vmatprep.subr.bf16.mxu0 0
        %1723 = vmatpush2.bf16.msra.mxu0 %v1642
        %1724 = vmatprep.subr.bf16.mxu0 0
        %1725 = vmatpush2.bf16.msra.mxu0 %v1641
        %1726 = vmatprep.subr.bf16.mxu0 0
        %1727 = vmatpush2.bf16.msra.mxu0 %v1640
        %1728 = vmatprep.mubr.bf16.mxu0 %v1430
        %1729 = vmatmul.mubr.bf16.gmra.mxu0 %v1429
        %v1730 = vpop.f32.mrf.mxu0
        %v1731 = vadd.f32 %v1502, %v1730
        %v1732 = vpop.f32.mrf.mxu0
        %v1733 = vpop.f32.mrf.mxu0
        %v1734 = vpop.f32.mrf.mxu0
        %1735 = vdwg.mxu0
        %1736 = vmatprep.subr.bf16.mxu0 0
        %1737 = vmatpush1.bf16.msra.mxu0 %v1655
        %1738 = vmatprep.subr.bf16.mxu0 0
        %1739 = vmatpush1.bf16.msra.mxu0 %v1654
        %1740 = vmatprep.subr.bf16.mxu0 0
        %1741 = vmatpush1.bf16.msra.mxu0 %v1653
        %1742 = vmatprep.subr.bf16.mxu0 0
        %1743 = vmatpush1.bf16.msra.mxu0 %v1652
        %1744 = vmatprep.subr.bf16.mxu0 0
        %1745 = vmatpush1.bf16.msra.mxu0 %v1651
        %1746 = vmatprep.subr.bf16.mxu0 0
        %1747 = vmatpush1.bf16.msra.mxu0 %v1650
        %1748 = vmatprep.subr.bf16.mxu0 0
        %1749 = vmatpush1.bf16.msra.mxu0 %v1649
        %1750 = vmatprep.subr.bf16.mxu0 0
        %1751 = vmatpush1.bf16.msra.mxu0 %v1648
        %1752 = vmatprep.subr.bf16.mxu0 0
        %1753 = vmatpush2.bf16.msra.mxu0 %v1663
        %1754 = vmatprep.subr.bf16.mxu0 0
        %1755 = vmatpush2.bf16.msra.mxu0 %v1662
        %1756 = vmatprep.subr.bf16.mxu0 0
        %1757 = vmatpush2.bf16.msra.mxu0 %v1661
        %1758 = vmatprep.subr.bf16.mxu0 0
        %1759 = vmatpush2.bf16.msra.mxu0 %v1660
        %1760 = vmatprep.subr.bf16.mxu0 0
        %1761 = vmatpush2.bf16.msra.mxu0 %v1659
        %1762 = vmatprep.subr.bf16.mxu0 0
        %1763 = vmatpush2.bf16.msra.mxu0 %v1658
        %1764 = vmatprep.subr.bf16.mxu0 0
        %1765 = vmatpush2.bf16.msra.mxu0 %v1657
        %1766 = vmatprep.subr.bf16.mxu0 0
        %1767 = vmatpush2.bf16.msra.mxu0 %v1656
        %1768 = vmatprep.mubr.bf16.mxu0 %v1432
        %1769 = vmatmul.mubr.bf16.gmra.mxu0 %v1431
        %v1770 = vpop.f32.mrf.mxu0
        %v1771 = vadd.f32 %v1731, %v1770
        %v1772 = vpop.f32.mrf.mxu0
        %v1773 = vpop.f32.mrf.mxu0
        %v1774 = vpop.f32.mrf.mxu0
        %1775 = vdwg.mxu0
        %v1776 = vmax.f32 %v1771, 0.0
        %v1777 = vld [vmem:[%s521] sm:$0xff]
        %1779 = vrot.lane.b32.xlu0 %v1776, 8
        %v1780 = vpop.permute.xlu0 %1779
        %v1782 = vsel %vm833, %v1777, %v1780
        %v1783 = vpack.c.bf16 %v1782, %v1782
        %v1784 = vpack.c.bf16 %v1780, %v1780
        %v1785 = vld [vmem:[%s8] sm:$0xff]
        %v1786 = vld [vmem:[%s8 + $0x8] sm:$0xff]
        %v1787 = vld [vmem:[%s8 + $0x10] sm:$0xff]
        %v1788 = vld [vmem:[%s8 + $0x18] sm:$0xff]
        %v1789 = vld [vmem:[%s8 + $0x20] sm:$0xff]
        %v1790 = vld [vmem:[%s8 + $0x28] sm:$0xff]
        %v1791 = vld [vmem:[%s8 + $0x30] sm:$0xff]
        %v1792 = vld [vmem:[%s8 + $0x38] sm:$0xff]
        %v1793 = vld [vmem:[%s8 + $0x40] sm:$0xff]
        %v1794 = vld [vmem:[%s8 + $0x48] sm:$0xff]
        %v1795 = vld [vmem:[%s8 + $0x50] sm:$0xff]
        %v1796 = vld [vmem:[%s8 + $0x58] sm:$0xff]
        %v1797 = vld [vmem:[%s8 + $0x60] sm:$0xff]
        %v1798 = vld [vmem:[%s8 + $0x68] sm:$0xff]
        %v1799 = vld [vmem:[%s8 + $0x70] sm:$0xff]
        %v1800 = vld [vmem:[%s8 + $0x78] sm:$0xff]
        %v1801 = vld [vmem:[%s8 + $0x80] sm:$0xff]
        %v1802 = vld [vmem:[%s9] sm:$0x3]
        %v1804 = vlaneseq
        %v1805 = vshrl.u32 %v1804, 7
        %v1806 = vsub.s32 0, %v1805
        %v1807 = vrot.slane %v1802, %v1806
        %v1808 = vlaneseq
        %v1809 = vshrl.u32 %v1808, 7
        %v1810 = vsub.s32 1, %v1809
        %v1811 = vrot.slane %v1802, %v1810
        %v1831 = vunpack.c.l.b16 %v1785
        %v1832 = vunpack.c.h.b16 %v1785
        %v1833 = vunpack.c.l.b16 %v1786
        %v1834 = vunpack.c.h.b16 %v1786
        %v1835 = vunpack.c.l.b16 %v1787
        %v1836 = vunpack.c.h.b16 %v1787
        %v1837 = vunpack.c.l.b16 %v1788
        %v1838 = vunpack.c.h.b16 %v1788
        %v1839 = vunpack.c.l.b16 %v1789
        %v1840 = vunpack.c.h.b16 %v1789
        %v1841 = vunpack.c.l.b16 %v1790
        %v1842 = vunpack.c.h.b16 %v1790
        %v1843 = vunpack.c.l.b16 %v1791
        %v1844 = vunpack.c.h.b16 %v1791
        %v1845 = vunpack.c.l.b16 %v1792
        %v1846 = vunpack.c.h.b16 %v1792
        %v1847 = vunpack.c.l.b16 %v1793
        %v1848 = vunpack.c.h.b16 %v1793
        %v1849 = vunpack.c.l.b16 %v1794
        %v1850 = vunpack.c.h.b16 %v1794
        %v1851 = vunpack.c.l.b16 %v1795
        %v1852 = vunpack.c.h.b16 %v1795
        %v1853 = vunpack.c.l.b16 %v1796
        %v1854 = vunpack.c.h.b16 %v1796
        %v1855 = vunpack.c.l.b16 %v1797
        %v1856 = vunpack.c.h.b16 %v1797
        %v1857 = vunpack.c.l.b16 %v1798
        %v1858 = vunpack.c.h.b16 %v1798
        %v1859 = vunpack.c.l.b16 %v1799
        %v1860 = vunpack.c.h.b16 %v1799
        %v1861 = vunpack.c.l.b16 %v1800
        %v1862 = vunpack.c.h.b16 %v1800
        %v1863 = vunpack.c.l.b16 %v1801
        %v1864 = vunpack.c.h.b16 %v1801
        %v1865 = vpack.c.b16 %v1833, %v1831
        %v1866 = vpack.c.b16 %v1834, %v1832
        %v1867 = vpack.c.b16 %v1837, %v1835
        %v1868 = vpack.c.b16 %v1838, %v1836
        %v1869 = vpack.c.b16 %v1841, %v1839
        %v1870 = vpack.c.b16 %v1842, %v1840
        %v1871 = vpack.c.b16 %v1845, %v1843
        %v1872 = vpack.c.b16 %v1846, %v1844
        %v1873 = vpack.c.b16 %v1849, %v1847
        %v1874 = vpack.c.b16 %v1850, %v1848
        %v1875 = vpack.c.b16 %v1853, %v1851
        %v1876 = vpack.c.b16 %v1854, %v1852
        %v1877 = vpack.c.b16 %v1857, %v1855
        %v1878 = vpack.c.b16 %v1858, %v1856
        %v1879 = vpack.c.b16 %v1861, %v1859
        %v1880 = vpack.c.b16 %v1862, %v1860
        %v1881 = vpack.c.b16 %v1863, %v1863
        %v1882 = vpack.c.b16 %v1864, %v1864
        %v1900 = vsel %vm833, %v1784, 0
        %vm1902 = vcmask 1043456
        %v1904 = vsel %vm1902, %v1881, 0
        %v1907 = vsel %vm1902, %v1882, 0
        %1909 = vmatprep.subr.bf16.mxu0 %v1880
        %1910 = vmatpush1.bf16.msra.mxu0 %v1879
        %1911 = vmatprep.subr.bf16.mxu0 %v1878
        %1912 = vmatpush1.bf16.msra.mxu0 %v1877
        %1913 = vmatprep.subr.bf16.mxu0 %v1876
        %1914 = vmatpush1.bf16.msra.mxu0 %v1875
        %1915 = vmatprep.subr.bf16.mxu0 %v1874
        %1916 = vmatpush1.bf16.msra.mxu0 %v1873
        %1917 = vmatprep.subr.bf16.mxu0 %v1872
        %1918 = vmatpush1.bf16.msra.mxu0 %v1871
        %1919 = vmatprep.subr.bf16.mxu0 %v1870
        %1920 = vmatpush1.bf16.msra.mxu0 %v1869
        %1921 = vmatprep.subr.bf16.mxu0 %v1868
        %1922 = vmatpush1.bf16.msra.mxu0 %v1867
        %1923 = vmatprep.subr.bf16.mxu0 %v1866
        %1924 = vmatpush1.bf16.msra.mxu0 %v1865
        %1925 = vmatprep.subr.bf16.mxu0 0
        %1926 = vmatpush2.bf16.msra.mxu0 0
        %1927 = vmatprep.subr.bf16.mxu0 0
        %1928 = vmatpush2.bf16.msra.mxu0 0
        %1929 = vmatprep.subr.bf16.mxu0 0
        %1930 = vmatpush2.bf16.msra.mxu0 0
        %1931 = vmatprep.subr.bf16.mxu0 0
        %1932 = vmatpush2.bf16.msra.mxu0 0
        %1933 = vmatprep.subr.bf16.mxu0 0
        %1934 = vmatpush2.bf16.msra.mxu0 0
        %1935 = vmatprep.subr.bf16.mxu0 0
        %1936 = vmatpush2.bf16.msra.mxu0 0
        %1937 = vmatprep.subr.bf16.mxu0 0
        %1938 = vmatpush2.bf16.msra.mxu0 0
        %1939 = vmatprep.subr.bf16.mxu0 %v1907
        %1940 = vmatpush2.bf16.msra.mxu0 %v1904
        %1941 = vmatprep.mubr.bf16.mxu0 %v1900
        %1942 = vmatmul.mubr.bf16.gmra.mxu0 %v1783
        %v1943 = vpop.f32.mrf.mxu0
        %v1944 = vadd.f32 %v1807, %v1943
        %v1945 = vpop.f32.mrf.mxu0
        %v1946 = vadd.f32 %v1811, %v1945
        %v1947 = vpop.f32.mrf.mxu0
        %v1948 = vpop.f32.mrf.mxu0
        %1949 = vdwg.mxu0
        %v1950 = vmax.f32 %v1944, 0.0
        %v1951 = vmax.f32 %v1946, 0.0
        %v1952 = vld [vmem:[%s10] sm:$0x3]
        %v1954 = vlaneseq
        %v1955 = vshrl.u32 %v1954, 7
        %v1956 = vsub.s32 0, %v1955
        %v1957 = vrot.slane %v1952, %v1956
        %v1958 = vlaneseq
        %v1959 = vshrl.u32 %v1958, 7
        %v1960 = vsub.s32 1, %v1959
        %v1961 = vrot.slane %v1952, %v1960
        %v1964 = vmul.f32 %v1950, %v1957
        %v1965 = vmul.f32 %v1951, %v1961
        %v1966 = vsel %vm833, %v1965, 0.0
        %v1967 = vadd.f32 %v1964, %v1966
        %1968 = vadd.xlane.f32.xlu0 %v1967
        %v1969 = vpop.xlane.xlu0 %1968
        %v1970 = vld [vmem:[#allocation2] sm:$0x1]
        %v1972 = vlaneseq
        %v1973 = vshrl.u32 %v1972, 7
        %v1974 = vsub.s32 0, %v1973
        %v1975 = vrot.slane %v1970, %v1974
        %v1977 = vadd.f32 %v1969, %v1975
        %vm1978 = vcmask 7168
        %1979 = vst.msk [vmem:[%s525] sm:$0xff] %vm1978, %v1977
        %p1980 = scmp.lt.s32.totalorder %s25, 1
        %s1981 = scalar_select %p1980, %s25, 1
        %s1982 = smul.addr %s1981, 8
        %s1983 = scalar_lea.vmem %s12, %s1982
        // Predicated region
        $region107: #{global_discriminator.1} parent=101 // pred_check
          %p1984 = pneg %p305
        $region108: #{global_discriminator.1} parent=101 // pred_check_branch
          %1986 = sbr.rel (%p1984) target = $region110
        $region109: #{global_discriminator.1} parent=101 // pred_region
          _
        $region110: #{global_discriminator.1} parent=101 // pred_fallthru
          _
      $region102: #{global_discriminator.1} parent=5 // pred_fallthru
        _
      %p1987 = scmp.le.s32.totalorder 2, %s20
      // Predicated region
      $region111: #{global_discriminator.1} parent=5 // pred_check
        %p1988 = pneg %p1987
      $region112: #{global_discriminator.1} parent=5 // pred_check_branch
        %1990 = sbr.rel (%p1988) target = $region114
      $region113: #{global_discriminator.1} parent=5 // pred_region
        %s1991 = ssub.s32 %s20, 2
        // Predicated region
        $region115: #{global_discriminator.1} parent=113 // pred_check
          %p1992 = pneg %p311
        $region116: #{global_discriminator.1} parent=113 // pred_check_branch
          %1994 = sbr.rel (%p1992) target = $region118
        $region117: #{global_discriminator.1} parent=113 // pred_region
          %p1995 = scmp.lt.s32.totalorder %s26, 1
          %s1996 = scalar_select %p1995, %s26, 1
          %s1997 = smul.addr %s1996, 8
          %s1998 = scalar_lea.vmem %s12, %s1997
        $region118: #{global_discriminator.1} parent=113 // pred_fallthru
          _
      $region114: #{global_discriminator.1} parent=5 // pred_fallthru
        _
    $region6: #{global_discriminator.1} parent=1 // loop_footer
      %s24 = sadd.s32 1, %s20
    $region7: #{global_discriminator.1} parent=1 // loop_footer_branch
      %19 = sbr.rel target = $region3
    $region8: #{global_discriminator.1} parent=1 // loop_exit
      _

</llo_original>
